<compile_context>
chip_gen: v7x
topology: tpu7x:2x2x1
jax: 0.10.0
libtpu: 0.0.40
codegen_flags: <defaults>
</compile_context>

<pallas_src>
import functools

import numpy as np
import jax
import jax.numpy as jnp
from jax.experimental import pallas as pl
from jax.experimental.pallas import tpu as pltpu


def _round_up(x, m):
    return (x + m - 1) // m * m


def _fourier_kernel(pos_ref, wp_ref, out_ref, *, D):
    # pos_ref: (TN, D) f32        raw positions
    # wp_ref : (D+1, 2F) f32      rows 0..D-1 = block-diag pi*freq (sin|cos halves),
    #                             row D = phase (+pi/2 on the cos half)
    # out_ref: (TN, D + 2F)
    pos = pos_ref[...]                            # (TN, D)
    w = wp_ref[:D, :]                             # (D, 2F)
    phase = wp_ref[D:D + 1, :]                    # (1, 2F)

    # One small MXU matmul -> angle already lane-contiguous for both halves.
    # HIGHEST precision keeps the f32 product exact enough for large angles.
    ang = jax.lax.dot_general(
        pos, w,
        dimension_numbers=(((1,), (0,)), ((), ())),
        precision=jax.lax.Precision.HIGHEST,
        preferred_element_type=jnp.float32) + phase        # (TN, 2F)

    # Single transcendental pass: first F lanes = sin, second F lanes = cos.
    trig = jnp.sin(ang)

    # Single full-width store.
    out_ref[...] = jnp.concatenate([pos, trig], axis=-1).astype(out_ref.dtype)


def fourier_position_encoding(pos, num_bands, max_resolution_list, *, tile_n=4096):
    """pos: (B, N, D) float; returns (B, N, D + 2*D*num_bands) float32."""
    B, N, D = pos.shape
    assert D == len(max_resolution_list)
    F = D * num_bands
    C = D + 2 * F
    M = B * N

    # Affine weight for the angle matmul (built once at trace time).
    freq = np.stack(
        [np.linspace(1.0, res / 2.0, num_bands).astype(np.float32)
         for res in max_resolution_list], axis=0)                     # (D, nb)
    W = np.zeros((D, 2 * F), dtype=np.float32)
    for d in range(D):
        W[d, d * num_bands:(d + 1) * num_bands] = np.float32(np.pi) * freq[d]
        W[d, F + d * num_bands:F + (d + 1) * num_bands] = np.float32(np.pi) * freq[d]
    phase = np.zeros((1, 2 * F), dtype=np.float32)
    phase[0, F:] = np.float32(np.pi / 2.0)
    wphase = jnp.asarray(np.concatenate([W, phase], axis=0))          # (D+1, 2F)

    pos2d = pos.reshape(M, D).astype(jnp.float32)   # free reshape (row-major)

    # Big, 8-aligned row tiles, clamped to the (rounded-up) problem size.
    tile = max(8, min(_round_up(tile_n, 8), _round_up(M, 8)))
    # v7x megacore: keep >= 2 grid steps so both TensorCores get work.
    if M > 8:
        tile = max(8, min(tile, _round_up(pl.cdiv(M, 2), 8)))
    grid = (pl.cdiv(M, tile),)

    kernel = functools.partial(_fourier_kernel, D=D)
    out2d = pl.pallas_call(
        kernel,
        out_shape=jax.ShapeDtypeStruct((M, C), jnp.float32),
        grid_spec=pltpu.PrefetchScalarGridSpec(
            num_scalar_prefetch=0,
            grid=grid,
            in_specs=[
                pl.BlockSpec((tile, D), lambda i: (i, 0)),
                pl.BlockSpec((D + 1, 2 * F), lambda i: (0, 0)),
            ],
            out_specs=pl.BlockSpec((tile, C), lambda i: (i, 0)),
        ),
        compiler_params=pltpu.CompilerParams(
            dimension_semantics=("parallel",)),
    )(pos2d, wphase)
    return out2d.reshape(B, N, C)


def _reference(pos, num_bands, max_resolution_list):
    B, N, D = pos.shape
    freq_bands = jnp.stack(
        [jnp.linspace(1.0, res / 2.0, num_bands, dtype=jnp.float32)
         for res in max_resolution_list], axis=0)                    # (D, nb)
    feats = pos[:, :, :, None] * freq_bands[None, None, :, :]        # (B,N,D,nb)
    feats = feats.reshape(B, N, -1)
    return jnp.concatenate(
        [pos, jnp.sin(jnp.pi * feats), jnp.cos(jnp.pi * feats)], axis=-1)


if __name__ == "__main__":
    # Module config: FourierPositionEncoding(n=3, num_bands=16, max_resolution=16)
    n_dims = 3
    num_bands = 16
    max_resolution = [16] * n_dims
    expected_channels = n_dims + 2 * n_dims * num_bands   # == module.channels == 99

    key = jax.random.PRNGKey(0)

    # Case 1: small shape (forces the >=2-grid-step clamp path), unit-scale pos.
    B, N = 2, 128
    pos = jax.random.uniform(key, (B, N, n_dims), dtype=jnp.float32,
                             minval=-1.0, maxval=1.0)
    out = jax.block_until_ready(
        fourier_position_encoding(pos, num_bands, max_resolution))
    assert out.shape == (B, N, expected_channels), out.shape
    ref = _reference(pos, num_bands, max_resolution)
    # few-ulp-of-angle differences from the pi-folding + sin(x+pi/2) fusion
    assert jnp.allclose(out, ref, atol=5e-5, rtol=1e-5), "mismatch vs reference"

    # Case 2: row count not divisible by the tile (exercises the padded tail
    # block) and pixel-scale positions (checks the HIGHEST-precision MXU path).
    B2, N2 = 1, 200
    pos2 = jax.random.uniform(jax.random.PRNGKey(1), (B2, N2, n_dims),
                              dtype=jnp.float32, minval=0.0, maxval=16.0)
    out2 = jax.block_until_ready(
        fourier_position_encoding(pos2, num_bands, max_resolution, tile_n=128))
    assert out2.shape == (B2, N2, expected_channels), out2.shape
    ref2 = _reference(pos2, num_bands, max_resolution)
    assert jnp.allclose(out2, ref2, atol=2e-3, rtol=1e-5), "mismatch (tail tile)"

    print("KERNEL_OK")
</pallas_src>

<mosaic_0001>
module attributes {stable_mosaic.version = 11 : i64} {
  func.func @_fourier_kernel(%arg0: i32, %arg1: memref<128x3xf32, #tpu.memory_space<vmem>>, %arg2: memref<4x96xf32, #tpu.memory_space<vmem>>, %arg3: memref<128x99xf32, #tpu.memory_space<vmem>>) attributes {dimension_semantics = [#tpu.dimension_semantics<parallel>], iteration_bounds = array<i64: 2>, scalar_prefetch = 0 : i64, scratch_operands = 0 : i64, tpu.core_type = #tpu.core_type<tc>, window_params = [{transform_indices = @transform_0, window_bounds = array<i64: 128, 3>}, {pipeline_mode = #tpu.pipeline_mode<synchronous>, transform_indices = @transform_1, window_bounds = array<i64: 4, 96>}, {transform_indices = @transform_2, window_bounds = array<i64: 128, 99>}]} {
    %c0 = arith.constant 0 : index
    %c0_0 = arith.constant 0 : index
    %0 = vector.load %arg1[%c0, %c0_0] : memref<128x3xf32, #tpu.memory_space<vmem>>, vector<128x3xf32>
    %c0_1 = arith.constant 0 : index
    %c0_2 = arith.constant 0 : index
    %1 = vector.load %arg2[%c0_1, %c0_2] : memref<4x96xf32, #tpu.memory_space<vmem>>, vector<3x96xf32>
    %c3 = arith.constant 3 : index
    %c0_3 = arith.constant 0 : index
    %2 = vector.load %arg2[%c3, %c0_3] : memref<4x96xf32, #tpu.memory_space<vmem>>, vector<1x96xf32>
    %cst = arith.constant dense<0.000000e+00> : vector<128x96xf32>
    %3 = tpu.matmul %0, %1, %cst {dimension_numbers = #tpu.dot_dimension_numbers<[1], [0], [0], [1], [0, 0, 1, 1], [], []>, precision = #tpu.contract_precision<fp32>} : vector<128x3xf32>, vector<3x96xf32>, vector<128x96xf32> -> vector<128x96xf32>
    %4 = vector.broadcast %2 : vector<1x96xf32> to vector<128x96xf32>
    %5 = arith.addf %3, %4 : vector<128x96xf32>
    %6 = math.sin %5 : vector<128x96xf32>
    %7 = tpu.concatenate %0, %6 in 1 : vector<128x3xf32>, vector<128x96xf32> -> vector<128x99xf32>
    %c0_4 = arith.constant 0 : index
    %c0_5 = arith.constant 0 : index
    %8 = vector.load %arg3[%c0_4, %c0_5] : memref<128x99xf32, #tpu.memory_space<vmem>>, vector<128x99xf32>
    tpu.vector_store %arg3[%c0_4, %c0_5], %7 {strides = array<i32>} : memref<128x99xf32, #tpu.memory_space<vmem>>, vector<128x99xf32>,
    return
  }
  func.func @transform_0(%arg0: i32) -> (i32, i32) {
    %c0_i32 = arith.constant 0 : i32
    %c0_i32_0 = arith.constant 0 : i32
    return %arg0, %c0_i32 : i32, i32
  }
  func.func @transform_1(%arg0: i32) -> (i32, i32) {
    %c0_i32 = arith.constant 0 : i32
    %c0_i32_0 = arith.constant 0 : i32
    %c0_i32_1 = arith.constant 0 : i32
    return %c0_i32, %c0_i32_0 : i32, i32
  }
  func.func @transform_2(%arg0: i32) -> (i32, i32) {
    %c0_i32 = arith.constant 0 : i32
    %c0_i32_0 = arith.constant 0 : i32
    return %arg0, %c0_i32 : i32, i32
  }
}

</mosaic_0001>

<llo_original>
// kernel: tpu_custom_call.1
$region0: #{tpu_custom_call.1}
  #allocation0 [shape = 'u32[]', space=smem, size = 0x4, offset = 0x4, fixed_abs, tag = 'smem constant byte address 0x4 - core index']
  #allocation1 [shape = 'u32[144,128]{1,0:T(1,128)}', space=vmem, size = 0x12000, scoped, tag = 'internal scratch']
  %s0 = inlined_call_operand.vmem [shape: f32[256,3], index: 0, kind: input, shape index: {}]
  %s1 = inlined_call_operand.vmem [shape: f32[4,96], index: 1, kind: input, shape index: {}]
  %s2 = inlined_call_operand.vmem [shape: f32[256,99], index: 2, kind: output, shape index: {}]
  %s3 = sld [smem:[#allocation0]]
  $region41: #{tpu_custom_call.1} parent=0
    _
  %s5 = ssub.s32 1, %s3
  %s6 = scalar_select 0, %s5, %s3
  loop: start=0, step=1, limit=4
  $region2: #{tpu_custom_call.1} parent=0 // loop_pre_header
    _
  $region3: #{tpu_custom_call.1} parent=0 // loop_header
    %s8 = sphi 0, %s12
    %p9 = scmp.ge.s32.totalorder %s8, 4
    %s18 = sphi 0, %s20
    %s21 = sphi 0, %s18
    %s22 = sphi 0, %s21
    %s38 = sphi 0, %s22
    %s42 = sphi 0, %s42
    %s44 = sphi 0, %s42
    %s45 = sphi 0, %s44
    %s59 = sphi 0, %s45
    %s65 = sphi 0, %s67
    %s68 = sphi 0, %s65
    %s69 = sphi 0, %s68
    %s85 = sphi 0, %s69
  $region4: #{tpu_custom_call.1} parent=0 // loop_header_branch
    %11 = sbr.rel (%p9) target = $region8
  $region5: #{tpu_custom_call.1} parent=0 // loop_body
    %s13 = ssub.s32 %s8, 1
    %s14 = ssub.s32 %s8, 2
    %s15 = sadd.s32 %s8, 1
    %s16 = ssub.s32 %s8, %s15
    %p17 = scmp.eq.s32.totalorder %s16, 0
    %s19 = sadd.s32 %s18, 1
    %s20 = scalar_select %p17, %s18, %s19
    %p23 = pneg %p17
    %p24 = scmp.eq.s32.totalorder %s8, 1
    %p25 = por %p23, %p24
    %p26 = scmp.ne.s32.totalorder %s18, %s21
    %p27 = scmp.eq.s32.totalorder %s8, 0
    %p28 = por %p26, %p27
    %p29 = scmp.ne.s32.totalorder %s18, %s21
    %p30 = scmp.eq.s32.totalorder %s13, 1
    %p31 = por %p29, %p30
    %p32 = scmp.ne.s32.totalorder %s21, %s22
    %p33 = scmp.eq.s32.totalorder %s13, 0
    %p34 = por %p32, %p33
    %p35 = scmp.ne.s32.totalorder %s21, %s22
    %p36 = scmp.eq.s32.totalorder %s14, 1
    %p37 = por %p35, %p36
    %p39 = scmp.ne.s32.totalorder %s22, %s38
    %p40 = scmp.eq.s32.totalorder %s14, 0
    %p41 = por %p39, %p40
    %s43 = sadd.s32 %s42, 1
    %p46 = scmp.eq.s32.totalorder %s8, 1
    %p47 = scmp.ne.s32.totalorder %s42, %s44
    %p48 = scmp.eq.s32.totalorder %s8, 0
    %p49 = por %p47, %p48
    %p50 = scmp.ne.s32.totalorder %s42, %s44
    %p51 = scmp.eq.s32.totalorder %s13, 1
    %p52 = por %p50, %p51
    %p53 = scmp.ne.s32.totalorder %s44, %s45
    %p54 = scmp.eq.s32.totalorder %s13, 0
    %p55 = por %p53, %p54
    %p56 = scmp.ne.s32.totalorder %s44, %s45
    %p57 = scmp.eq.s32.totalorder %s14, 1
    %p58 = por %p56, %p57
    %p60 = scmp.ne.s32.totalorder %s45, %s59
    %p61 = scmp.eq.s32.totalorder %s14, 0
    %p62 = por %p60, %p61
    %s63 = ssub.s32 %s8, %s15
    %p64 = scmp.eq.s32.totalorder %s63, 0
    %s66 = sadd.s32 %s65, 1
    %s67 = scalar_select %p64, %s65, %s66
    %p70 = pneg %p64
    %p71 = scmp.eq.s32.totalorder %s8, 1
    %p72 = por %p70, %p71
    %p73 = scmp.ne.s32.totalorder %s65, %s68
    %p74 = scmp.eq.s32.totalorder %s8, 0
    %p75 = por %p73, %p74
    %p76 = scmp.ne.s32.totalorder %s65, %s68
    %p77 = scmp.eq.s32.totalorder %s13, 1
    %p78 = por %p76, %p77
    %p79 = scmp.ne.s32.totalorder %s68, %s69
    %p80 = scmp.eq.s32.totalorder %s13, 0
    %p81 = por %p79, %p80
    %p82 = scmp.ne.s32.totalorder %s68, %s69
    %p83 = scmp.eq.s32.totalorder %s14, 1
    %p84 = por %p82, %p83
    %p86 = scmp.ne.s32.totalorder %s69, %s85
    %p87 = scmp.eq.s32.totalorder %s14, 0
    %p88 = por %p86, %p87
    %p89 = scmp.le.s32.totalorder 1, %s8
    %p90 = scmp.lt.s32.totalorder %s8, 3
    %p91 = pnand %p89, %p90
    %p92 = pneg %p91
    // Predicated region
    $region9: #{tpu_custom_call.1} parent=5 // pred_check
      _
    $region10: #{tpu_custom_call.1} parent=5 // pred_check_branch
      %94 = sbr.rel (%p91) target = $region12
    $region11: #{tpu_custom_call.1} parent=5 // pred_region
      %s95 = ssub.s32 %s8, 1
      // Predicated region
      $region13: #{tpu_custom_call.1} parent=11 // pred_check
        %p96 = pneg %p55
      $region14: #{tpu_custom_call.1} parent=11 // pred_check_branch
        %98 = sbr.rel (%p96) target = $region16
      $region15: #{tpu_custom_call.1} parent=11 // pred_region
        _
      $region16: #{tpu_custom_call.1} parent=11 // pred_fallthru
        _
    $region12: #{tpu_custom_call.1} parent=5 // pred_fallthru
      _
    %p99 = scmp.lt.s32.totalorder %s8, 2
    // Predicated region
    $region17: #{tpu_custom_call.1} parent=5 // pred_check
      %p100 = pneg %p99
    $region18: #{tpu_custom_call.1} parent=5 // pred_check_branch
      %102 = sbr.rel (%p100) target = $region20
    $region19: #{tpu_custom_call.1} parent=5 // pred_region
      // Predicated region
      $region21: #{tpu_custom_call.1} parent=19 // pred_check
        %p103 = pneg %p28
      $region22: #{tpu_custom_call.1} parent=19 // pred_check_branch
        %105 = sbr.rel (%p103) target = $region24
      $region23: #{tpu_custom_call.1} parent=19 // pred_region
        %s106 = smul.u32 16, %s8
        %p107 = scmp.lt.s32.totalorder %s106, 31
        %s108 = scalar_select %p107, %s106, 31
        %s109 = smul.addr %s108, 8
        %s110 = scalar_lea.vmem %s0, %s109
        %s111 = smul.u32 16, %s8
      $region24: #{tpu_custom_call.1} parent=19 // pred_fallthru
        _
    $region20: #{tpu_custom_call.1} parent=5 // pred_fallthru
      _
    %p112 = scmp.le.s32.totalorder 1, %s8
    %p113 = scmp.lt.s32.totalorder %s8, 3
    %p114 = pnand %p112, %p113
    %p115 = pneg %p114
    // Predicated region
    $region25: #{tpu_custom_call.1} parent=5 // pred_check
      _
    $region26: #{tpu_custom_call.1} parent=5 // pred_check_branch
      %117 = sbr.rel (%p114) target = $region28
    $region27: #{tpu_custom_call.1} parent=5 // pred_region
      %s118 = ssub.s32 %s8, 1
      %s119 = smul.u32 16, %s13
      %p120 = scmp.lt.s32.totalorder %s119, 31
      %s121 = scalar_select %p120, %s119, 31
      %s122 = smul.addr %s121, 8
      %s123 = scalar_lea.vmem %s0, %s122
      %p124 = pneg %p34
      %p125 = pneg %p31
      %p126 = pneg %p55
      %p127 = pneg %p52
      %p128 = pneg %p81
      %p129 = pneg %p78
      %s130 = smul.u32 16, %s13
      %p131 = scmp.lt.s32.totalorder %s130, 31
      %s132 = scalar_select %p131, %s130, 31
      %s133 = smul.addr %s132, 8
      %s134 = scalar_lea.vmem %s2, %s133
      %s135 = smul.u32 16, %s13
      %p136 = scmp.lt.s32.totalorder %s135, 31
      %s137 = scalar_select %p136, %s135, 31
      %s138 = smul.addr %s137, 8
      %s139 = scalar_lea.vmem %s0, %s138
      %s140 = smul.u32 16, %s13
      %s141 = smul.u32 16, %s13
      %p142 = scmp.lt.s32.totalorder %s141, 31
      %s143 = scalar_select %p142, %s141, 31
      %s144 = smul.addr %s143, 8
      %s145 = scalar_lea.vmem %s2, %s144
      %s146 = smul.u32 16, %s13
      %v147 = vld [vmem:[%s139] sm:$0xff]
      %v148 = vld [vmem:[%s139 + $0x8] sm:$0xff]
      %v149 = vld [vmem:[%s139 + $0x10] sm:$0xff]
      %v150 = vld [vmem:[%s139 + $0x18] sm:$0xff]
      %v151 = vld [vmem:[%s139 + $0x20] sm:$0xff]
      %v152 = vld [vmem:[%s139 + $0x28] sm:$0xff]
      %v153 = vld [vmem:[%s139 + $0x30] sm:$0xff]
      %v154 = vld [vmem:[%s139 + $0x38] sm:$0xff]
      %v155 = vld [vmem:[%s139 + $0x40] sm:$0xff]
      %v156 = vld [vmem:[%s139 + $0x48] sm:$0xff]
      %v157 = vld [vmem:[%s139 + $0x50] sm:$0xff]
      %v158 = vld [vmem:[%s139 + $0x58] sm:$0xff]
      %v159 = vld [vmem:[%s139 + $0x60] sm:$0xff]
      %v160 = vld [vmem:[%s139 + $0x68] sm:$0xff]
      %v161 = vld [vmem:[%s139 + $0x70] sm:$0xff]
      %v162 = vld [vmem:[%s139 + $0x78] sm:$0xff]
      %v163 = vld [vmem:[%s1] sm:$0x7]
      %v164 = vld [vmem:[%s1 + $0x3] sm:$0x1]
      %v165 = vlaneseq
      %v166 = vshrl.u32 %v165, 7
      %v167 = vsub.s32 0, %v166
      %v168 = vrot.slane %v164, %v167
      %vm169 = vcmask 23552
      %v171 = vsel %vm169, %v147, 0
      %v174 = vsel %vm169, %v148, 0
      %v177 = vsel %vm169, %v149, 0
      %v180 = vsel %vm169, %v150, 0
      %v183 = vsel %vm169, %v151, 0
      %v186 = vsel %vm169, %v152, 0
      %v189 = vsel %vm169, %v153, 0
      %v192 = vsel %vm169, %v154, 0
      %v195 = vsel %vm169, %v155, 0
      %v198 = vsel %vm169, %v156, 0
      %v201 = vsel %vm169, %v157, 0
      %v204 = vsel %vm169, %v158, 0
      %v207 = vsel %vm169, %v159, 0
      %v210 = vsel %vm169, %v160, 0
      %v213 = vsel %vm169, %v161, 0
      %v216 = vsel %vm169, %v162, 0
      %vm218 = vcmask 1042432
      %v220 = vsel %vm218, %v163, 0
      %222 = vmatprep.subr.mxu0 0.0
      %v223 = vand.u32 %v220, 4294901760
      %224 = vmatpush1.msra.mxu0 %v223
      %225 = vmatprep.subr.mxu0 0.0
      %226 = vmatpush1.msra.mxu0 0.0
      %227 = vmatprep.subr.mxu0 0.0
      %228 = vmatpush1.msra.mxu0 0.0
      %229 = vmatprep.subr.mxu0 0.0
      %230 = vmatpush1.msra.mxu0 0.0
      %231 = vmatprep.subr.mxu0 0.0
      %232 = vmatpush1.msra.mxu0 0.0
      %233 = vmatprep.subr.mxu0 0.0
      %234 = vmatpush1.msra.mxu0 0.0
      %235 = vmatprep.subr.mxu0 0.0
      %236 = vmatpush1.msra.mxu0 0.0
      %237 = vmatprep.subr.mxu0 0.0
      %238 = vmatpush1.msra.mxu0 0.0
      %239 = vmatprep.subr.mxu0 0.0
      %240 = vmatpush1.msra.mxu0 0.0
      %241 = vmatprep.subr.mxu0 0.0
      %242 = vmatpush1.msra.mxu0 0.0
      %243 = vmatprep.subr.mxu0 0.0
      %244 = vmatpush1.msra.mxu0 0.0
      %245 = vmatprep.subr.mxu0 0.0
      %246 = vmatpush1.msra.mxu0 0.0
      %247 = vmatprep.subr.mxu0 0.0
      %248 = vmatpush1.msra.mxu0 0.0
      %249 = vmatprep.subr.mxu0 0.0
      %250 = vmatpush1.msra.mxu0 0.0
      %251 = vmatprep.subr.mxu0 0.0
      %252 = vmatpush1.msra.mxu0 0.0
      %253 = vmatprep.subr.mxu0 0.0
      %254 = vmatpush1.msra.mxu0 0.0
      %255 = vmatprep.subr.mxu0 0.0
      %256 = vmatpush1.msra.mxu0 0.0
      %257 = vmatprep.subr.mxu0 0.0
      %258 = vmatpush1.msra.mxu0 0.0
      %259 = vmatprep.subr.mxu0 0.0
      %260 = vmatpush1.msra.mxu0 0.0
      %261 = vmatprep.subr.mxu0 0.0
      %262 = vmatpush1.msra.mxu0 0.0
      %263 = vmatprep.subr.mxu0 0.0
      %264 = vmatpush1.msra.mxu0 0.0
      %265 = vmatprep.subr.mxu0 0.0
      %266 = vmatpush1.msra.mxu0 0.0
      %267 = vmatprep.subr.mxu0 0.0
      %268 = vmatpush1.msra.mxu0 0.0
      %269 = vmatprep.subr.mxu0 0.0
      %270 = vmatpush1.msra.mxu0 0.0
      %271 = vmatprep.subr.mxu0 0.0
      %272 = vmatpush1.msra.mxu0 0.0
      %273 = vmatprep.subr.mxu0 0.0
      %274 = vmatpush1.msra.mxu0 0.0
      %275 = vmatprep.subr.mxu0 0.0
      %276 = vmatpush1.msra.mxu0 0.0
      %277 = vmatprep.subr.mxu0 0.0
      %278 = vmatpush1.msra.mxu0 0.0
      %279 = vmatprep.subr.mxu0 0.0
      %280 = vmatpush1.msra.mxu0 0.0
      %281 = vmatprep.subr.mxu0 0.0
      %282 = vmatpush1.msra.mxu0 0.0
      %283 = vmatprep.subr.mxu0 0.0
      %284 = vmatpush1.msra.mxu0 0.0
      %285 = vmatprep.subr.mxu0 0.0
      %286 = vmatpush1.msra.mxu0 0.0
      %287 = vmatprep.mubr.f32.mxu0 0.0
      %v288 = vand.u32 %v171, 4294901760
      %v289 = vsub.f32 %v171, %v288
      %v290 = vand.u32 %v289, 4294901760
      %v291 = vsub.f32 %v289, %v290
      %v292 = vand.u32 %v291, 4294901760
      %293 = vmatmul.mubr.f32.gmra.mrb[0].mxu0 %v292
      %v294 = vpop.f32.mrb[0].mxu0
      %v295 = vadd.f32 %v168, %v294
      %v296 = vpop.f32.mrb[0].mxu0
      %297 = vmatprep.mubr.f32.mxu0 0.0
      %v298 = vand.u32 %v174, 4294901760
      %v299 = vsub.f32 %v174, %v298
      %v300 = vand.u32 %v299, 4294901760
      %v301 = vsub.f32 %v299, %v300
      %v302 = vand.u32 %v301, 4294901760
      %303 = vmatmul.mubr.f32.gmra.mrb[0].mxu0 %v302
      %v304 = vpop.f32.mrb[0].mxu0
      %v305 = vadd.f32 %v168, %v304
      %v306 = vpop.f32.mrb[0].mxu0
      %307 = vmatprep.mubr.f32.mxu0 0.0
      %v308 = vand.u32 %v177, 4294901760
      %v309 = vsub.f32 %v177, %v308
      %v310 = vand.u32 %v309, 4294901760
      %v311 = vsub.f32 %v309, %v310
      %v312 = vand.u32 %v311, 4294901760
      %313 = vmatmul.mubr.f32.gmra.mrb[0].mxu0 %v312
      %v314 = vpop.f32.mrb[0].mxu0
      %v315 = vadd.f32 %v168, %v314
      %v316 = vpop.f32.mrb[0].mxu0
      %317 = vmatprep.mubr.f32.mxu0 0.0
      %v318 = vand.u32 %v180, 4294901760
      %v319 = vsub.f32 %v180, %v318
      %v320 = vand.u32 %v319, 4294901760
      %v321 = vsub.f32 %v319, %v320
      %v322 = vand.u32 %v321, 4294901760
      %323 = vmatmul.mubr.f32.gmra.mrb[0].mxu0 %v322
      %v324 = vpop.f32.mrb[0].mxu0
      %v325 = vadd.f32 %v168, %v324
      %v326 = vpop.f32.mrb[0].mxu0
      %327 = vmatprep.mubr.f32.mxu0 0.0
      %v328 = vand.u32 %v183, 4294901760
      %v329 = vsub.f32 %v183, %v328
      %v330 = vand.u32 %v329, 4294901760
      %v331 = vsub.f32 %v329, %v330
      %v332 = vand.u32 %v331, 4294901760
      %333 = vmatmul.mubr.f32.gmra.mrb[0].mxu0 %v332
      %v334 = vpop.f32.mrb[0].mxu0
      %v335 = vadd.f32 %v168, %v334
      %v336 = vpop.f32.mrb[0].mxu0
      %337 = vmatprep.mubr.f32.mxu0 0.0
      %v338 = vand.u32 %v186, 4294901760
      %v339 = vsub.f32 %v186, %v338
      %v340 = vand.u32 %v339, 4294901760
      %v341 = vsub.f32 %v339, %v340
      %v342 = vand.u32 %v341, 4294901760
      %343 = vmatmul.mubr.f32.gmra.mrb[0].mxu0 %v342
      %v344 = vpop.f32.mrb[0].mxu0
      %v345 = vadd.f32 %v168, %v344
      %v346 = vpop.f32.mrb[0].mxu0
      %347 = vmatprep.mubr.f32.mxu0 0.0
      %v348 = vand.u32 %v189, 4294901760
      %v349 = vsub.f32 %v189, %v348
      %v350 = vand.u32 %v349, 4294901760
      %v351 = vsub.f32 %v349, %v350
      %v352 = vand.u32 %v351, 4294901760
      %353 = vmatmul.mubr.f32.gmra.mrb[0].mxu0 %v352
      %v354 = vpop.f32.mrb[0].mxu0
      %v355 = vadd.f32 %v168, %v354
      %v356 = vpop.f32.mrb[0].mxu0
      %357 = vmatprep.mubr.f32.mxu0 0.0
      %v358 = vand.u32 %v192, 4294901760
      %v359 = vsub.f32 %v192, %v358
      %v360 = vand.u32 %v359, 4294901760
      %v361 = vsub.f32 %v359, %v360
      %v362 = vand.u32 %v361, 4294901760
      %363 = vmatmul.mubr.f32.gmra.mrb[0].mxu0 %v362
      %v364 = vpop.f32.mrb[0].mxu0
      %v365 = vadd.f32 %v168, %v364
      %v366 = vpop.f32.mrb[0].mxu0
      %367 = vmatprep.mubr.f32.mxu0 0.0
      %v368 = vand.u32 %v195, 4294901760
      %v369 = vsub.f32 %v195, %v368
      %v370 = vand.u32 %v369, 4294901760
      %v371 = vsub.f32 %v369, %v370
      %v372 = vand.u32 %v371, 4294901760
      %373 = vmatmul.mubr.f32.gmra.mrb[0].mxu0 %v372
      %v374 = vpop.f32.mrb[0].mxu0
      %v375 = vadd.f32 %v168, %v374
      %v376 = vpop.f32.mrb[0].mxu0
      %377 = vmatprep.mubr.f32.mxu0 0.0
      %v378 = vand.u32 %v198, 4294901760
      %v379 = vsub.f32 %v198, %v378
      %v380 = vand.u32 %v379, 4294901760
      %v381 = vsub.f32 %v379, %v380
      %v382 = vand.u32 %v381, 4294901760
      %383 = vmatmul.mubr.f32.gmra.mrb[0].mxu0 %v382
      %v384 = vpop.f32.mrb[0].mxu0
      %v385 = vadd.f32 %v168, %v384
      %v386 = vpop.f32.mrb[0].mxu0
      %387 = vmatprep.mubr.f32.mxu0 0.0
      %v388 = vand.u32 %v201, 4294901760
      %v389 = vsub.f32 %v201, %v388
      %v390 = vand.u32 %v389, 4294901760
      %v391 = vsub.f32 %v389, %v390
      %v392 = vand.u32 %v391, 4294901760
      %393 = vmatmul.mubr.f32.gmra.mrb[0].mxu0 %v392
      %v394 = vpop.f32.mrb[0].mxu0
      %v395 = vadd.f32 %v168, %v394
      %v396 = vpop.f32.mrb[0].mxu0
      %397 = vmatprep.mubr.f32.mxu0 0.0
      %v398 = vand.u32 %v204, 4294901760
      %v399 = vsub.f32 %v204, %v398
      %v400 = vand.u32 %v399, 4294901760
      %v401 = vsub.f32 %v399, %v400
      %v402 = vand.u32 %v401, 4294901760
      %403 = vmatmul.mubr.f32.gmra.mrb[0].mxu0 %v402
      %v404 = vpop.f32.mrb[0].mxu0
      %v405 = vadd.f32 %v168, %v404
      %v406 = vpop.f32.mrb[0].mxu0
      %407 = vmatprep.mubr.f32.mxu0 0.0
      %v408 = vand.u32 %v207, 4294901760
      %v409 = vsub.f32 %v207, %v408
      %v410 = vand.u32 %v409, 4294901760
      %v411 = vsub.f32 %v409, %v410
      %v412 = vand.u32 %v411, 4294901760
      %413 = vmatmul.mubr.f32.gmra.mrb[0].mxu0 %v412
      %v414 = vpop.f32.mrb[0].mxu0
      %v415 = vadd.f32 %v168, %v414
      %v416 = vpop.f32.mrb[0].mxu0
      %417 = vmatprep.mubr.f32.mxu0 0.0
      %v418 = vand.u32 %v210, 4294901760
      %v419 = vsub.f32 %v210, %v418
      %v420 = vand.u32 %v419, 4294901760
      %v421 = vsub.f32 %v419, %v420
      %v422 = vand.u32 %v421, 4294901760
      %423 = vmatmul.mubr.f32.gmra.mrb[0].mxu0 %v422
      %v424 = vpop.f32.mrb[0].mxu0
      %v425 = vadd.f32 %v168, %v424
      %v426 = vpop.f32.mrb[0].mxu0
      %427 = vmatprep.mubr.f32.mxu0 0.0
      %v428 = vand.u32 %v213, 4294901760
      %v429 = vsub.f32 %v213, %v428
      %v430 = vand.u32 %v429, 4294901760
      %v431 = vsub.f32 %v429, %v430
      %v432 = vand.u32 %v431, 4294901760
      %433 = vmatmul.mubr.f32.gmra.mrb[0].mxu0 %v432
      %v434 = vpop.f32.mrb[0].mxu0
      %v435 = vadd.f32 %v168, %v434
      %v436 = vpop.f32.mrb[0].mxu0
      %437 = vmatprep.mubr.f32.mxu0 0.0
      %v438 = vand.u32 %v216, 4294901760
      %v439 = vsub.f32 %v216, %v438
      %v440 = vand.u32 %v439, 4294901760
      %v441 = vsub.f32 %v439, %v440
      %v442 = vand.u32 %v441, 4294901760
      %443 = vmatmul.mubr.f32.gmra.mrb[0].mxu0 %v442
      %v444 = vpop.f32.mrb[0].mxu0
      %v445 = vadd.f32 %v168, %v444
      %v446 = vpop.f32.mrb[0].mxu0
      %447 = vdwg.mxu0
      %448 = vmatprep.subr.mxu0 0.0
      %v449 = vand.u32 %v220, 4294901760
      %v450 = vsub.f32 %v220, %v449
      %v451 = vand.u32 %v450, 4294901760
      %v452 = vsub.f32 %v450, %v451
      %v453 = vand.u32 %v452, 4294901760
      %454 = vmatpush1.msra.mxu0 %v453
      %455 = vmatprep.subr.mxu0 0.0
      %456 = vmatpush1.msra.mxu0 0.0
      %457 = vmatprep.subr.mxu0 0.0
      %458 = vmatpush1.msra.mxu0 0.0
      %459 = vmatprep.subr.mxu0 0.0
      %460 = vmatpush1.msra.mxu0 0.0
      %461 = vmatprep.subr.mxu0 0.0
      %462 = vmatpush1.msra.mxu0 0.0
      %463 = vmatprep.subr.mxu0 0.0
      %464 = vmatpush1.msra.mxu0 0.0
      %465 = vmatprep.subr.mxu0 0.0
      %466 = vmatpush1.msra.mxu0 0.0
      %467 = vmatprep.subr.mxu0 0.0
      %468 = vmatpush1.msra.mxu0 0.0
      %469 = vmatprep.subr.mxu0 0.0
      %470 = vmatpush1.msra.mxu0 0.0
      %471 = vmatprep.subr.mxu0 0.0
      %472 = vmatpush1.msra.mxu0 0.0
      %473 = vmatprep.subr.mxu0 0.0
      %474 = vmatpush1.msra.mxu0 0.0
      %475 = vmatprep.subr.mxu0 0.0
      %476 = vmatpush1.msra.mxu0 0.0
      %477 = vmatprep.subr.mxu0 0.0
      %478 = vmatpush1.msra.mxu0 0.0
      %479 = vmatprep.subr.mxu0 0.0
      %480 = vmatpush1.msra.mxu0 0.0
      %481 = vmatprep.subr.mxu0 0.0
      %482 = vmatpush1.msra.mxu0 0.0
      %483 = vmatprep.subr.mxu0 0.0
      %484 = vmatpush1.msra.mxu0 0.0
      %485 = vmatprep.subr.mxu0 0.0
      %486 = vmatpush1.msra.mxu0 0.0
      %487 = vmatprep.subr.mxu0 0.0
      %488 = vmatpush1.msra.mxu0 0.0
      %489 = vmatprep.subr.mxu0 0.0
      %490 = vmatpush1.msra.mxu0 0.0
      %491 = vmatprep.subr.mxu0 0.0
      %492 = vmatpush1.msra.mxu0 0.0
      %493 = vmatprep.subr.mxu0 0.0
      %494 = vmatpush1.msra.mxu0 0.0
      %495 = vmatprep.subr.mxu0 0.0
      %496 = vmatpush1.msra.mxu0 0.0
      %497 = vmatprep.subr.mxu0 0.0
      %498 = vmatpush1.msra.mxu0 0.0
      %499 = vmatprep.subr.mxu0 0.0
      %500 = vmatpush1.msra.mxu0 0.0
      %501 = vmatprep.subr.mxu0 0.0
      %502 = vmatpush1.msra.mxu0 0.0
      %503 = vmatprep.subr.mxu0 0.0
      %504 = vmatpush1.msra.mxu0 0.0
      %505 = vmatprep.subr.mxu0 0.0
      %506 = vmatpush1.msra.mxu0 0.0
      %507 = vmatprep.subr.mxu0 0.0
      %508 = vmatpush1.msra.mxu0 0.0
      %509 = vmatprep.subr.mxu0 0.0
      %510 = vmatpush1.msra.mxu0 0.0
      %511 = vmatprep.subr.mxu0 0.0
      %512 = vmatpush1.msra.mxu0 0.0
      %513 = vmatprep.subr.mxu0 0.0
      %514 = vmatpush1.msra.mxu0 0.0
      %515 = vmatprep.subr.mxu0 0.0
      %516 = vmatpush1.msra.mxu0 0.0
      %517 = vmatprep.mubr.f32.mxu0 0.0
      %v518 = vand.u32 %v171, 4294901760
      %519 = vmatmul.mubr.f32.gmra.mrb[0].mxu0 %v518
      %v520 = vpop.f32.mrb[0].mxu0
      %v521 = vadd.f32 %v295, %v520
      %v522 = vpop.f32.mrb[0].mxu0
      %523 = vmatprep.mubr.f32.mxu0 0.0
      %v524 = vand.u32 %v174, 4294901760
      %525 = vmatmul.mubr.f32.gmra.mrb[0].mxu0 %v524
      %v526 = vpop.f32.mrb[0].mxu0
      %v527 = vadd.f32 %v305, %v526
      %v528 = vpop.f32.mrb[0].mxu0
      %529 = vmatprep.mubr.f32.mxu0 0.0
      %v530 = vand.u32 %v177, 4294901760
      %531 = vmatmul.mubr.f32.gmra.mrb[0].mxu0 %v530
      %v532 = vpop.f32.mrb[0].mxu0
      %v533 = vadd.f32 %v315, %v532
      %v534 = vpop.f32.mrb[0].mxu0
      %535 = vmatprep.mubr.f32.mxu0 0.0
      %v536 = vand.u32 %v180, 4294901760
      %537 = vmatmul.mubr.f32.gmra.mrb[0].mxu0 %v536
      %v538 = vpop.f32.mrb[0].mxu0
      %v539 = vadd.f32 %v325, %v538
      %v540 = vpop.f32.mrb[0].mxu0
      %541 = vmatprep.mubr.f32.mxu0 0.0
      %v542 = vand.u32 %v183, 4294901760
      %543 = vmatmul.mubr.f32.gmra.mrb[0].mxu0 %v542
      %v544 = vpop.f32.mrb[0].mxu0
      %v545 = vadd.f32 %v335, %v544
      %v546 = vpop.f32.mrb[0].mxu0
      %547 = vmatprep.mubr.f32.mxu0 0.0
      %v548 = vand.u32 %v186, 4294901760
      %549 = vmatmul.mubr.f32.gmra.mrb[0].mxu0 %v548
      %v550 = vpop.f32.mrb[0].mxu0
      %v551 = vadd.f32 %v345, %v550
      %v552 = vpop.f32.mrb[0].mxu0
      %553 = vmatprep.mubr.f32.mxu0 0.0
      %v554 = vand.u32 %v189, 4294901760
      %555 = vmatmul.mubr.f32.gmra.mrb[0].mxu0 %v554
      %v556 = vpop.f32.mrb[0].mxu0
      %v557 = vadd.f32 %v355, %v556
      %v558 = vpop.f32.mrb[0].mxu0
      %559 = vmatprep.mubr.f32.mxu0 0.0
      %v560 = vand.u32 %v192, 4294901760
      %561 = vmatmul.mubr.f32.gmra.mrb[0].mxu0 %v560
      %v562 = vpop.f32.mrb[0].mxu0
      %v563 = vadd.f32 %v365, %v562
      %v564 = vpop.f32.mrb[0].mxu0
      %565 = vmatprep.mubr.f32.mxu0 0.0
      %v566 = vand.u32 %v195, 4294901760
      %567 = vmatmul.mubr.f32.gmra.mrb[0].mxu0 %v566
      %v568 = vpop.f32.mrb[0].mxu0
      %v569 = vadd.f32 %v375, %v568
      %v570 = vpop.f32.mrb[0].mxu0
      %571 = vmatprep.mubr.f32.mxu0 0.0
      %v572 = vand.u32 %v198, 4294901760
      %573 = vmatmul.mubr.f32.gmra.mrb[0].mxu0 %v572
      %v574 = vpop.f32.mrb[0].mxu0
      %v575 = vadd.f32 %v385, %v574
      %v576 = vpop.f32.mrb[0].mxu0
      %577 = vmatprep.mubr.f32.mxu0 0.0
      %v578 = vand.u32 %v201, 4294901760
      %579 = vmatmul.mubr.f32.gmra.mrb[0].mxu0 %v578
      %v580 = vpop.f32.mrb[0].mxu0
      %v581 = vadd.f32 %v395, %v580
      %v582 = vpop.f32.mrb[0].mxu0
      %583 = vmatprep.mubr.f32.mxu0 0.0
      %v584 = vand.u32 %v204, 4294901760
      %585 = vmatmul.mubr.f32.gmra.mrb[0].mxu0 %v584
      %v586 = vpop.f32.mrb[0].mxu0
      %v587 = vadd.f32 %v405, %v586
      %v588 = vpop.f32.mrb[0].mxu0
      %589 = vmatprep.mubr.f32.mxu0 0.0
      %v590 = vand.u32 %v207, 4294901760
      %591 = vmatmul.mubr.f32.gmra.mrb[0].mxu0 %v590
      %v592 = vpop.f32.mrb[0].mxu0
      %v593 = vadd.f32 %v415, %v592
      %v594 = vpop.f32.mrb[0].mxu0
      %595 = vmatprep.mubr.f32.mxu0 0.0
      %v596 = vand.u32 %v210, 4294901760
      %597 = vmatmul.mubr.f32.gmra.mrb[0].mxu0 %v596
      %v598 = vpop.f32.mrb[0].mxu0
      %v599 = vadd.f32 %v425, %v598
      %v600 = vpop.f32.mrb[0].mxu0
      %601 = vmatprep.mubr.f32.mxu0 0.0
      %v602 = vand.u32 %v213, 4294901760
      %603 = vmatmul.mubr.f32.gmra.mrb[0].mxu0 %v602
      %v604 = vpop.f32.mrb[0].mxu0
      %v605 = vadd.f32 %v435, %v604
      %v606 = vpop.f32.mrb[0].mxu0
      %607 = vmatprep.mubr.f32.mxu0 0.0
      %v608 = vand.u32 %v216, 4294901760
      %609 = vmatmul.mubr.f32.gmra.mrb[0].mxu0 %v608
      %v610 = vpop.f32.mrb[0].mxu0
      %v611 = vadd.f32 %v445, %v610
      %v612 = vpop.f32.mrb[0].mxu0
      %613 = vdwg.mxu0
      %614 = vmatprep.subr.mxu0 0.0
      %v615 = vand.u32 %v220, 4294901760
      %v616 = vsub.f32 %v220, %v615
      %617 = vmatpush1.msra.mxu0 %v616
      %618 = vmatprep.subr.mxu0 0.0
      %619 = vmatpush1.msra.mxu0 0.0
      %620 = vmatprep.subr.mxu0 0.0
      %621 = vmatpush1.msra.mxu0 0.0
      %622 = vmatprep.subr.mxu0 0.0
      %623 = vmatpush1.msra.mxu0 0.0
      %624 = vmatprep.subr.mxu0 0.0
      %625 = vmatpush1.msra.mxu0 0.0
      %626 = vmatprep.subr.mxu0 0.0
      %627 = vmatpush1.msra.mxu0 0.0
      %628 = vmatprep.subr.mxu0 0.0
      %629 = vmatpush1.msra.mxu0 0.0
      %630 = vmatprep.subr.mxu0 0.0
      %631 = vmatpush1.msra.mxu0 0.0
      %632 = vmatprep.subr.mxu0 0.0
      %633 = vmatpush1.msra.mxu0 0.0
      %634 = vmatprep.subr.mxu0 0.0
      %635 = vmatpush1.msra.mxu0 0.0
      %636 = vmatprep.subr.mxu0 0.0
      %637 = vmatpush1.msra.mxu0 0.0
      %638 = vmatprep.subr.mxu0 0.0
      %639 = vmatpush1.msra.mxu0 0.0
      %640 = vmatprep.subr.mxu0 0.0
      %641 = vmatpush1.msra.mxu0 0.0
      %642 = vmatprep.subr.mxu0 0.0
      %643 = vmatpush1.msra.mxu0 0.0
      %644 = vmatprep.subr.mxu0 0.0
      %645 = vmatpush1.msra.mxu0 0.0
      %646 = vmatprep.subr.mxu0 0.0
      %647 = vmatpush1.msra.mxu0 0.0
      %648 = vmatprep.subr.mxu0 0.0
      %649 = vmatpush1.msra.mxu0 0.0
      %650 = vmatprep.subr.mxu0 0.0
      %651 = vmatpush1.msra.mxu0 0.0
      %652 = vmatprep.subr.mxu0 0.0
      %653 = vmatpush1.msra.mxu0 0.0
      %654 = vmatprep.subr.mxu0 0.0
      %655 = vmatpush1.msra.mxu0 0.0
      %656 = vmatprep.subr.mxu0 0.0
      %657 = vmatpush1.msra.mxu0 0.0
      %658 = vmatprep.subr.mxu0 0.0
      %659 = vmatpush1.msra.mxu0 0.0
      %660 = vmatprep.subr.mxu0 0.0
      %661 = vmatpush1.msra.mxu0 0.0
      %662 = vmatprep.subr.mxu0 0.0
      %663 = vmatpush1.msra.mxu0 0.0
      %664 = vmatprep.subr.mxu0 0.0
      %665 = vmatpush1.msra.mxu0 0.0
      %666 = vmatprep.subr.mxu0 0.0
      %667 = vmatpush1.msra.mxu0 0.0
      %668 = vmatprep.subr.mxu0 0.0
      %669 = vmatpush1.msra.mxu0 0.0
      %670 = vmatprep.subr.mxu0 0.0
      %671 = vmatpush1.msra.mxu0 0.0
      %672 = vmatprep.subr.mxu0 0.0
      %673 = vmatpush1.msra.mxu0 0.0
      %674 = vmatprep.subr.mxu0 0.0
      %675 = vmatpush1.msra.mxu0 0.0
      %676 = vmatprep.subr.mxu0 0.0
      %677 = vmatpush1.msra.mxu0 0.0
      %678 = vmatprep.subr.mxu0 0.0
      %679 = vmatpush1.msra.mxu0 0.0
      %680 = vmatprep.mubr.f32.mxu0 0.0
      %v681 = vand.u32 %v171, 4294901760
      %v682 = vsub.f32 %v171, %v681
      %683 = vmatmul.mubr.f32.gmra.mrb[0].mxu0 %v682
      %v684 = vpop.f32.mrb[0].mxu0
      %v685 = vadd.f32 %v521, %v684
      %v686 = vpop.f32.mrb[0].mxu0
      %687 = vmatprep.mubr.f32.mxu0 0.0
      %v688 = vand.u32 %v174, 4294901760
      %v689 = vsub.f32 %v174, %v688
      %690 = vmatmul.mubr.f32.gmra.mrb[0].mxu0 %v689
      %v691 = vpop.f32.mrb[0].mxu0
      %v692 = vadd.f32 %v527, %v691
      %v693 = vpop.f32.mrb[0].mxu0
      %694 = vmatprep.mubr.f32.mxu0 0.0
      %v695 = vand.u32 %v177, 4294901760
      %v696 = vsub.f32 %v177, %v695
      %697 = vmatmul.mubr.f32.gmra.mrb[0].mxu0 %v696
      %v698 = vpop.f32.mrb[0].mxu0
      %v699 = vadd.f32 %v533, %v698
      %v700 = vpop.f32.mrb[0].mxu0
      %701 = vmatprep.mubr.f32.mxu0 0.0
      %v702 = vand.u32 %v180, 4294901760
      %v703 = vsub.f32 %v180, %v702
      %704 = vmatmul.mubr.f32.gmra.mrb[0].mxu0 %v703
      %v705 = vpop.f32.mrb[0].mxu0
      %v706 = vadd.f32 %v539, %v705
      %v707 = vpop.f32.mrb[0].mxu0
      %708 = vmatprep.mubr.f32.mxu0 0.0
      %v709 = vand.u32 %v183, 4294901760
      %v710 = vsub.f32 %v183, %v709
      %711 = vmatmul.mubr.f32.gmra.mrb[0].mxu0 %v710
      %v712 = vpop.f32.mrb[0].mxu0
      %v713 = vadd.f32 %v545, %v712
      %v714 = vpop.f32.mrb[0].mxu0
      %715 = vmatprep.mubr.f32.mxu0 0.0
      %v716 = vand.u32 %v186, 4294901760
      %v717 = vsub.f32 %v186, %v716
      %718 = vmatmul.mubr.f32.gmra.mrb[0].mxu0 %v717
      %v719 = vpop.f32.mrb[0].mxu0
      %v720 = vadd.f32 %v551, %v719
      %v721 = vpop.f32.mrb[0].mxu0
      %722 = vmatprep.mubr.f32.mxu0 0.0
      %v723 = vand.u32 %v189, 4294901760
      %v724 = vsub.f32 %v189, %v723
      %725 = vmatmul.mubr.f32.gmra.mrb[0].mxu0 %v724
      %v726 = vpop.f32.mrb[0].mxu0
      %v727 = vadd.f32 %v557, %v726
      %v728 = vpop.f32.mrb[0].mxu0
      %729 = vmatprep.mubr.f32.mxu0 0.0
      %v730 = vand.u32 %v192, 4294901760
      %v731 = vsub.f32 %v192, %v730
      %732 = vmatmul.mubr.f32.gmra.mrb[0].mxu0 %v731
      %v733 = vpop.f32.mrb[0].mxu0
      %v734 = vadd.f32 %v563, %v733
      %v735 = vpop.f32.mrb[0].mxu0
      %736 = vmatprep.mubr.f32.mxu0 0.0
      %v737 = vand.u32 %v195, 4294901760
      %v738 = vsub.f32 %v195, %v737
      %739 = vmatmul.mubr.f32.gmra.mrb[0].mxu0 %v738
      %v740 = vpop.f32.mrb[0].mxu0
      %v741 = vadd.f32 %v569, %v740
      %v742 = vpop.f32.mrb[0].mxu0
      %743 = vmatprep.mubr.f32.mxu0 0.0
      %v744 = vand.u32 %v198, 4294901760
      %v745 = vsub.f32 %v198, %v744
      %746 = vmatmul.mubr.f32.gmra.mrb[0].mxu0 %v745
      %v747 = vpop.f32.mrb[0].mxu0
      %v748 = vadd.f32 %v575, %v747
      %v749 = vpop.f32.mrb[0].mxu0
      %750 = vmatprep.mubr.f32.mxu0 0.0
      %v751 = vand.u32 %v201, 4294901760
      %v752 = vsub.f32 %v201, %v751
      %753 = vmatmul.mubr.f32.gmra.mrb[0].mxu0 %v752
      %v754 = vpop.f32.mrb[0].mxu0
      %v755 = vadd.f32 %v581, %v754
      %v756 = vpop.f32.mrb[0].mxu0
      %757 = vmatprep.mubr.f32.mxu0 0.0
      %v758 = vand.u32 %v204, 4294901760
      %v759 = vsub.f32 %v204, %v758
      %760 = vmatmul.mubr.f32.gmra.mrb[0].mxu0 %v759
      %v761 = vpop.f32.mrb[0].mxu0
      %v762 = vadd.f32 %v587, %v761
      %v763 = vpop.f32.mrb[0].mxu0
      %764 = vmatprep.mubr.f32.mxu0 0.0
      %v765 = vand.u32 %v207, 4294901760
      %v766 = vsub.f32 %v207, %v765
      %767 = vmatmul.mubr.f32.gmra.mrb[0].mxu0 %v766
      %v768 = vpop.f32.mrb[0].mxu0
      %v769 = vadd.f32 %v593, %v768
      %v770 = vpop.f32.mrb[0].mxu0
      %771 = vmatprep.mubr.f32.mxu0 0.0
      %v772 = vand.u32 %v210, 4294901760
      %v773 = vsub.f32 %v210, %v772
      %774 = vmatmul.mubr.f32.gmra.mrb[0].mxu0 %v773
      %v775 = vpop.f32.mrb[0].mxu0
      %v776 = vadd.f32 %v599, %v775
      %v777 = vpop.f32.mrb[0].mxu0
      %778 = vmatprep.mubr.f32.mxu0 0.0
      %v779 = vand.u32 %v213, 4294901760
      %v780 = vsub.f32 %v213, %v779
      %781 = vmatmul.mubr.f32.gmra.mrb[0].mxu0 %v780
      %v782 = vpop.f32.mrb[0].mxu0
      %v783 = vadd.f32 %v605, %v782
      %v784 = vpop.f32.mrb[0].mxu0
      %785 = vmatprep.mubr.f32.mxu0 0.0
      %v786 = vand.u32 %v216, 4294901760
      %v787 = vsub.f32 %v216, %v786
      %788 = vmatmul.mubr.f32.gmra.mrb[0].mxu0 %v787
      %v789 = vpop.f32.mrb[0].mxu0
      %v790 = vadd.f32 %v611, %v789
      %v791 = vpop.f32.mrb[0].mxu0
      %792 = vdwg.mxu0
      %793 = vmatprep.subr.mxu0 0.0
      %v794 = vand.u32 %v220, 4294901760
      %795 = vmatpush1.msra.mxu0 %v794
      %796 = vmatprep.subr.mxu0 0.0
      %797 = vmatpush1.msra.mxu0 0.0
      %798 = vmatprep.subr.mxu0 0.0
      %799 = vmatpush1.msra.mxu0 0.0
      %800 = vmatprep.subr.mxu0 0.0
      %801 = vmatpush1.msra.mxu0 0.0
      %802 = vmatprep.subr.mxu0 0.0
      %803 = vmatpush1.msra.mxu0 0.0
      %804 = vmatprep.subr.mxu0 0.0
      %805 = vmatpush1.msra.mxu0 0.0
      %806 = vmatprep.subr.mxu0 0.0
      %807 = vmatpush1.msra.mxu0 0.0
      %808 = vmatprep.subr.mxu0 0.0
      %809 = vmatpush1.msra.mxu0 0.0
      %810 = vmatprep.subr.mxu0 0.0
      %811 = vmatpush1.msra.mxu0 0.0
      %812 = vmatprep.subr.mxu0 0.0
      %813 = vmatpush1.msra.mxu0 0.0
      %814 = vmatprep.subr.mxu0 0.0
      %815 = vmatpush1.msra.mxu0 0.0
      %816 = vmatprep.subr.mxu0 0.0
      %817 = vmatpush1.msra.mxu0 0.0
      %818 = vmatprep.subr.mxu0 0.0
      %819 = vmatpush1.msra.mxu0 0.0
      %820 = vmatprep.subr.mxu0 0.0
      %821 = vmatpush1.msra.mxu0 0.0
      %822 = vmatprep.subr.mxu0 0.0
      %823 = vmatpush1.msra.mxu0 0.0
      %824 = vmatprep.subr.mxu0 0.0
      %825 = vmatpush1.msra.mxu0 0.0
      %826 = vmatprep.subr.mxu0 0.0
      %827 = vmatpush1.msra.mxu0 0.0
      %828 = vmatprep.subr.mxu0 0.0
      %829 = vmatpush1.msra.mxu0 0.0
      %830 = vmatprep.subr.mxu0 0.0
      %831 = vmatpush1.msra.mxu0 0.0
      %832 = vmatprep.subr.mxu0 0.0
      %833 = vmatpush1.msra.mxu0 0.0
      %834 = vmatprep.subr.mxu0 0.0
      %835 = vmatpush1.msra.mxu0 0.0
      %836 = vmatprep.subr.mxu0 0.0
      %837 = vmatpush1.msra.mxu0 0.0
      %838 = vmatprep.subr.mxu0 0.0
      %839 = vmatpush1.msra.mxu0 0.0
      %840 = vmatprep.subr.mxu0 0.0
      %841 = vmatpush1.msra.mxu0 0.0
      %842 = vmatprep.subr.mxu0 0.0
      %843 = vmatpush1.msra.mxu0 0.0
      %844 = vmatprep.subr.mxu0 0.0
      %845 = vmatpush1.msra.mxu0 0.0
      %846 = vmatprep.subr.mxu0 0.0
      %847 = vmatpush1.msra.mxu0 0.0
      %848 = vmatprep.subr.mxu0 0.0
      %849 = vmatpush1.msra.mxu0 0.0
      %850 = vmatprep.subr.mxu0 0.0
      %851 = vmatpush1.msra.mxu0 0.0
      %852 = vmatprep.subr.mxu0 0.0
      %853 = vmatpush1.msra.mxu0 0.0
      %854 = vmatprep.subr.mxu0 0.0
      %855 = vmatpush1.msra.mxu0 0.0
      %856 = vmatprep.subr.mxu0 0.0
      %857 = vmatpush1.msra.mxu0 0.0
      %858 = vmatprep.mubr.f32.mxu0 0.0
      %v859 = vand.u32 %v171, 4294901760
      %v860 = vsub.f32 %v171, %v859
      %v861 = vand.u32 %v860, 4294901760
      %862 = vmatmul.mubr.f32.gmra.mrb[0].mxu0 %v861
      %v863 = vpop.f32.mrb[0].mxu0
      %v864 = vadd.f32 %v685, %v863
      %v865 = vpop.f32.mrb[0].mxu0
      %866 = vmatprep.mubr.f32.mxu0 0.0
      %v867 = vand.u32 %v174, 4294901760
      %v868 = vsub.f32 %v174, %v867
      %v869 = vand.u32 %v868, 4294901760
      %870 = vmatmul.mubr.f32.gmra.mrb[0].mxu0 %v869
      %v871 = vpop.f32.mrb[0].mxu0
      %v872 = vadd.f32 %v692, %v871
      %v873 = vpop.f32.mrb[0].mxu0
      %874 = vmatprep.mubr.f32.mxu0 0.0
      %v875 = vand.u32 %v177, 4294901760
      %v876 = vsub.f32 %v177, %v875
      %v877 = vand.u32 %v876, 4294901760
      %878 = vmatmul.mubr.f32.gmra.mrb[0].mxu0 %v877
      %v879 = vpop.f32.mrb[0].mxu0
      %v880 = vadd.f32 %v699, %v879
      %v881 = vpop.f32.mrb[0].mxu0
      %882 = vmatprep.mubr.f32.mxu0 0.0
      %v883 = vand.u32 %v180, 4294901760
      %v884 = vsub.f32 %v180, %v883
      %v885 = vand.u32 %v884, 4294901760
      %886 = vmatmul.mubr.f32.gmra.mrb[0].mxu0 %v885
      %v887 = vpop.f32.mrb[0].mxu0
      %v888 = vadd.f32 %v706, %v887
      %v889 = vpop.f32.mrb[0].mxu0
      %890 = vmatprep.mubr.f32.mxu0 0.0
      %v891 = vand.u32 %v183, 4294901760
      %v892 = vsub.f32 %v183, %v891
      %v893 = vand.u32 %v892, 4294901760
      %894 = vmatmul.mubr.f32.gmra.mrb[0].mxu0 %v893
      %v895 = vpop.f32.mrb[0].mxu0
      %v896 = vadd.f32 %v713, %v895
      %v897 = vpop.f32.mrb[0].mxu0
      %898 = vmatprep.mubr.f32.mxu0 0.0
      %v899 = vand.u32 %v186, 4294901760
      %v900 = vsub.f32 %v186, %v899
      %v901 = vand.u32 %v900, 4294901760
      %902 = vmatmul.mubr.f32.gmra.mrb[0].mxu0 %v901
      %v903 = vpop.f32.mrb[0].mxu0
      %v904 = vadd.f32 %v720, %v903
      %v905 = vpop.f32.mrb[0].mxu0
      %906 = vmatprep.mubr.f32.mxu0 0.0
      %v907 = vand.u32 %v189, 4294901760
      %v908 = vsub.f32 %v189, %v907
      %v909 = vand.u32 %v908, 4294901760
      %910 = vmatmul.mubr.f32.gmra.mrb[0].mxu0 %v909
      %v911 = vpop.f32.mrb[0].mxu0
      %v912 = vadd.f32 %v727, %v911
      %v913 = vpop.f32.mrb[0].mxu0
      %914 = vmatprep.mubr.f32.mxu0 0.0
      %v915 = vand.u32 %v192, 4294901760
      %v916 = vsub.f32 %v192, %v915
      %v917 = vand.u32 %v916, 4294901760
      %918 = vmatmul.mubr.f32.gmra.mrb[0].mxu0 %v917
      %v919 = vpop.f32.mrb[0].mxu0
      %v920 = vadd.f32 %v734, %v919
      %v921 = vpop.f32.mrb[0].mxu0
      %922 = vmatprep.mubr.f32.mxu0 0.0
      %v923 = vand.u32 %v195, 4294901760
      %v924 = vsub.f32 %v195, %v923
      %v925 = vand.u32 %v924, 4294901760
      %926 = vmatmul.mubr.f32.gmra.mrb[0].mxu0 %v925
      %v927 = vpop.f32.mrb[0].mxu0
      %v928 = vadd.f32 %v741, %v927
      %v929 = vpop.f32.mrb[0].mxu0
      %930 = vmatprep.mubr.f32.mxu0 0.0
      %v931 = vand.u32 %v198, 4294901760
      %v932 = vsub.f32 %v198, %v931
      %v933 = vand.u32 %v932, 4294901760
      %934 = vmatmul.mubr.f32.gmra.mrb[0].mxu0 %v933
      %v935 = vpop.f32.mrb[0].mxu0
      %v936 = vadd.f32 %v748, %v935
      %v937 = vpop.f32.mrb[0].mxu0
      %938 = vmatprep.mubr.f32.mxu0 0.0
      %v939 = vand.u32 %v201, 4294901760
      %v940 = vsub.f32 %v201, %v939
      %v941 = vand.u32 %v940, 4294901760
      %942 = vmatmul.mubr.f32.gmra.mrb[0].mxu0 %v941
      %v943 = vpop.f32.mrb[0].mxu0
      %v944 = vadd.f32 %v755, %v943
      %v945 = vpop.f32.mrb[0].mxu0
      %946 = vmatprep.mubr.f32.mxu0 0.0
      %v947 = vand.u32 %v204, 4294901760
      %v948 = vsub.f32 %v204, %v947
      %v949 = vand.u32 %v948, 4294901760
      %950 = vmatmul.mubr.f32.gmra.mrb[0].mxu0 %v949
      %v951 = vpop.f32.mrb[0].mxu0
      %v952 = vadd.f32 %v762, %v951
      %v953 = vpop.f32.mrb[0].mxu0
      %954 = vmatprep.mubr.f32.mxu0 0.0
      %v955 = vand.u32 %v207, 4294901760
      %v956 = vsub.f32 %v207, %v955
      %v957 = vand.u32 %v956, 4294901760
      %958 = vmatmul.mubr.f32.gmra.mrb[0].mxu0 %v957
      %v959 = vpop.f32.mrb[0].mxu0
      %v960 = vadd.f32 %v769, %v959
      %v961 = vpop.f32.mrb[0].mxu0
      %962 = vmatprep.mubr.f32.mxu0 0.0
      %v963 = vand.u32 %v210, 4294901760
      %v964 = vsub.f32 %v210, %v963
      %v965 = vand.u32 %v964, 4294901760
      %966 = vmatmul.mubr.f32.gmra.mrb[0].mxu0 %v965
      %v967 = vpop.f32.mrb[0].mxu0
      %v968 = vadd.f32 %v776, %v967
      %v969 = vpop.f32.mrb[0].mxu0
      %970 = vmatprep.mubr.f32.mxu0 0.0
      %v971 = vand.u32 %v213, 4294901760
      %v972 = vsub.f32 %v213, %v971
      %v973 = vand.u32 %v972, 4294901760
      %974 = vmatmul.mubr.f32.gmra.mrb[0].mxu0 %v973
      %v975 = vpop.f32.mrb[0].mxu0
      %v976 = vadd.f32 %v783, %v975
      %v977 = vpop.f32.mrb[0].mxu0
      %978 = vmatprep.mubr.f32.mxu0 0.0
      %v979 = vand.u32 %v216, 4294901760
      %v980 = vsub.f32 %v216, %v979
      %v981 = vand.u32 %v980, 4294901760
      %982 = vmatmul.mubr.f32.gmra.mrb[0].mxu0 %v981
      %v983 = vpop.f32.mrb[0].mxu0
      %v984 = vadd.f32 %v790, %v983
      %v985 = vpop.f32.mrb[0].mxu0
      %986 = vdwg.mxu0
      %987 = vmatprep.subr.mxu0 0.0
      %v988 = vand.u32 %v220, 4294901760
      %v989 = vsub.f32 %v220, %v988
      %v990 = vand.u32 %v989, 4294901760
      %991 = vmatpush1.msra.mxu0 %v990
      %992 = vmatprep.subr.mxu0 0.0
      %993 = vmatpush1.msra.mxu0 0.0
      %994 = vmatprep.subr.mxu0 0.0
      %995 = vmatpush1.msra.mxu0 0.0
      %996 = vmatprep.subr.mxu0 0.0
      %997 = vmatpush1.msra.mxu0 0.0
      %998 = vmatprep.subr.mxu0 0.0
      %999 = vmatpush1.msra.mxu0 0.0
      %1000 = vmatprep.subr.mxu0 0.0
      %1001 = vmatpush1.msra.mxu0 0.0
      %1002 = vmatprep.subr.mxu0 0.0
      %1003 = vmatpush1.msra.mxu0 0.0
      %1004 = vmatprep.subr.mxu0 0.0
      %1005 = vmatpush1.msra.mxu0 0.0
      %1006 = vmatprep.subr.mxu0 0.0
      %1007 = vmatpush1.msra.mxu0 0.0
      %1008 = vmatprep.subr.mxu0 0.0
      %1009 = vmatpush1.msra.mxu0 0.0
      %1010 = vmatprep.subr.mxu0 0.0
      %1011 = vmatpush1.msra.mxu0 0.0
      %1012 = vmatprep.subr.mxu0 0.0
      %1013 = vmatpush1.msra.mxu0 0.0
      %1014 = vmatprep.subr.mxu0 0.0
      %1015 = vmatpush1.msra.mxu0 0.0
      %1016 = vmatprep.subr.mxu0 0.0
      %1017 = vmatpush1.msra.mxu0 0.0
      %1018 = vmatprep.subr.mxu0 0.0
      %1019 = vmatpush1.msra.mxu0 0.0
      %1020 = vmatprep.subr.mxu0 0.0
      %1021 = vmatpush1.msra.mxu0 0.0
      %1022 = vmatprep.subr.mxu0 0.0
      %1023 = vmatpush1.msra.mxu0 0.0
      %1024 = vmatprep.subr.mxu0 0.0
      %1025 = vmatpush1.msra.mxu0 0.0
      %1026 = vmatprep.subr.mxu0 0.0
      %1027 = vmatpush1.msra.mxu0 0.0
      %1028 = vmatprep.subr.mxu0 0.0
      %1029 = vmatpush1.msra.mxu0 0.0
      %1030 = vmatprep.subr.mxu0 0.0
      %1031 = vmatpush1.msra.mxu0 0.0
      %1032 = vmatprep.subr.mxu0 0.0
      %1033 = vmatpush1.msra.mxu0 0.0
      %1034 = vmatprep.subr.mxu0 0.0
      %1035 = vmatpush1.msra.mxu0 0.0
      %1036 = vmatprep.subr.mxu0 0.0
      %1037 = vmatpush1.msra.mxu0 0.0
      %1038 = vmatprep.subr.mxu0 0.0
      %1039 = vmatpush1.msra.mxu0 0.0
      %1040 = vmatprep.subr.mxu0 0.0
      %1041 = vmatpush1.msra.mxu0 0.0
      %1042 = vmatprep.subr.mxu0 0.0
      %1043 = vmatpush1.msra.mxu0 0.0
      %1044 = vmatprep.subr.mxu0 0.0
      %1045 = vmatpush1.msra.mxu0 0.0
      %1046 = vmatprep.subr.mxu0 0.0
      %1047 = vmatpush1.msra.mxu0 0.0
      %1048 = vmatprep.subr.mxu0 0.0
      %1049 = vmatpush1.msra.mxu0 0.0
      %1050 = vmatprep.subr.mxu0 0.0
      %1051 = vmatpush1.msra.mxu0 0.0
      %1052 = vmatprep.subr.mxu0 0.0
      %1053 = vmatpush1.msra.mxu0 0.0
      %1054 = vmatprep.mubr.f32.mxu0 0.0
      %v1055 = vand.u32 %v171, 4294901760
      %1056 = vmatmul.mubr.f32.gmra.mrb[0].mxu0 %v1055
      %v1057 = vpop.f32.mrb[0].mxu0
      %v1058 = vadd.f32 %v864, %v1057
      %v1059 = vpop.f32.mrb[0].mxu0
      %1060 = vmatprep.mubr.f32.mxu0 0.0
      %v1061 = vand.u32 %v174, 4294901760
      %1062 = vmatmul.mubr.f32.gmra.mrb[0].mxu0 %v1061
      %v1063 = vpop.f32.mrb[0].mxu0
      %v1064 = vadd.f32 %v872, %v1063
      %v1065 = vpop.f32.mrb[0].mxu0
      %1066 = vmatprep.mubr.f32.mxu0 0.0
      %v1067 = vand.u32 %v177, 4294901760
      %1068 = vmatmul.mubr.f32.gmra.mrb[0].mxu0 %v1067
      %v1069 = vpop.f32.mrb[0].mxu0
      %v1070 = vadd.f32 %v880, %v1069
      %v1071 = vpop.f32.mrb[0].mxu0
      %1072 = vmatprep.mubr.f32.mxu0 0.0
      %v1073 = vand.u32 %v180, 4294901760
      %1074 = vmatmul.mubr.f32.gmra.mrb[0].mxu0 %v1073
      %v1075 = vpop.f32.mrb[0].mxu0
      %v1076 = vadd.f32 %v888, %v1075
      %v1077 = vpop.f32.mrb[0].mxu0
      %1078 = vmatprep.mubr.f32.mxu0 0.0
      %v1079 = vand.u32 %v183, 4294901760
      %1080 = vmatmul.mubr.f32.gmra.mrb[0].mxu0 %v1079
      %v1081 = vpop.f32.mrb[0].mxu0
      %v1082 = vadd.f32 %v896, %v1081
      %v1083 = vpop.f32.mrb[0].mxu0
      %1084 = vmatprep.mubr.f32.mxu0 0.0
      %v1085 = vand.u32 %v186, 4294901760
      %1086 = vmatmul.mubr.f32.gmra.mrb[0].mxu0 %v1085
      %v1087 = vpop.f32.mrb[0].mxu0
      %v1088 = vadd.f32 %v904, %v1087
      %v1089 = vpop.f32.mrb[0].mxu0
      %1090 = vmatprep.mubr.f32.mxu0 0.0
      %v1091 = vand.u32 %v189, 4294901760
      %1092 = vmatmul.mubr.f32.gmra.mrb[0].mxu0 %v1091
      %v1093 = vpop.f32.mrb[0].mxu0
      %v1094 = vadd.f32 %v912, %v1093
      %v1095 = vpop.f32.mrb[0].mxu0
      %1096 = vmatprep.mubr.f32.mxu0 0.0
      %v1097 = vand.u32 %v192, 4294901760
      %1098 = vmatmul.mubr.f32.gmra.mrb[0].mxu0 %v1097
      %v1099 = vpop.f32.mrb[0].mxu0
      %v1100 = vadd.f32 %v920, %v1099
      %v1101 = vpop.f32.mrb[0].mxu0
      %1102 = vmatprep.mubr.f32.mxu0 0.0
      %v1103 = vand.u32 %v195, 4294901760
      %1104 = vmatmul.mubr.f32.gmra.mrb[0].mxu0 %v1103
      %v1105 = vpop.f32.mrb[0].mxu0
      %v1106 = vadd.f32 %v928, %v1105
      %v1107 = vpop.f32.mrb[0].mxu0
      %1108 = vmatprep.mubr.f32.mxu0 0.0
      %v1109 = vand.u32 %v198, 4294901760
      %1110 = vmatmul.mubr.f32.gmra.mrb[0].mxu0 %v1109
      %v1111 = vpop.f32.mrb[0].mxu0
      %v1112 = vadd.f32 %v936, %v1111
      %v1113 = vpop.f32.mrb[0].mxu0
      %1114 = vmatprep.mubr.f32.mxu0 0.0
      %v1115 = vand.u32 %v201, 4294901760
      %1116 = vmatmul.mubr.f32.gmra.mrb[0].mxu0 %v1115
      %v1117 = vpop.f32.mrb[0].mxu0
      %v1118 = vadd.f32 %v944, %v1117
      %v1119 = vpop.f32.mrb[0].mxu0
      %1120 = vmatprep.mubr.f32.mxu0 0.0
      %v1121 = vand.u32 %v204, 4294901760
      %1122 = vmatmul.mubr.f32.gmra.mrb[0].mxu0 %v1121
      %v1123 = vpop.f32.mrb[0].mxu0
      %v1124 = vadd.f32 %v952, %v1123
      %v1125 = vpop.f32.mrb[0].mxu0
      %1126 = vmatprep.mubr.f32.mxu0 0.0
      %v1127 = vand.u32 %v207, 4294901760
      %1128 = vmatmul.mubr.f32.gmra.mrb[0].mxu0 %v1127
      %v1129 = vpop.f32.mrb[0].mxu0
      %v1130 = vadd.f32 %v960, %v1129
      %v1131 = vpop.f32.mrb[0].mxu0
      %1132 = vmatprep.mubr.f32.mxu0 0.0
      %v1133 = vand.u32 %v210, 4294901760
      %1134 = vmatmul.mubr.f32.gmra.mrb[0].mxu0 %v1133
      %v1135 = vpop.f32.mrb[0].mxu0
      %v1136 = vadd.f32 %v968, %v1135
      %v1137 = vpop.f32.mrb[0].mxu0
      %1138 = vmatprep.mubr.f32.mxu0 0.0
      %v1139 = vand.u32 %v213, 4294901760
      %1140 = vmatmul.mubr.f32.gmra.mrb[0].mxu0 %v1139
      %v1141 = vpop.f32.mrb[0].mxu0
      %v1142 = vadd.f32 %v976, %v1141
      %v1143 = vpop.f32.mrb[0].mxu0
      %1144 = vmatprep.mubr.f32.mxu0 0.0
      %v1145 = vand.u32 %v216, 4294901760
      %1146 = vmatmul.mubr.f32.gmra.mrb[0].mxu0 %v1145
      %v1147 = vpop.f32.mrb[0].mxu0
      %v1148 = vadd.f32 %v984, %v1147
      %v1149 = vpop.f32.mrb[0].mxu0
      %1150 = vdwg.mxu0
      %1151 = vmatprep.subr.mxu0 0.0
      %v1152 = vand.u32 %v220, 4294901760
      %1153 = vmatpush1.msra.mxu0 %v1152
      %1154 = vmatprep.subr.mxu0 0.0
      %1155 = vmatpush1.msra.mxu0 0.0
      %1156 = vmatprep.subr.mxu0 0.0
      %1157 = vmatpush1.msra.mxu0 0.0
      %1158 = vmatprep.subr.mxu0 0.0
      %1159 = vmatpush1.msra.mxu0 0.0
      %1160 = vmatprep.subr.mxu0 0.0
      %1161 = vmatpush1.msra.mxu0 0.0
      %1162 = vmatprep.subr.mxu0 0.0
      %1163 = vmatpush1.msra.mxu0 0.0
      %1164 = vmatprep.subr.mxu0 0.0
      %1165 = vmatpush1.msra.mxu0 0.0
      %1166 = vmatprep.subr.mxu0 0.0
      %1167 = vmatpush1.msra.mxu0 0.0
      %1168 = vmatprep.subr.mxu0 0.0
      %1169 = vmatpush1.msra.mxu0 0.0
      %1170 = vmatprep.subr.mxu0 0.0
      %1171 = vmatpush1.msra.mxu0 0.0
      %1172 = vmatprep.subr.mxu0 0.0
      %1173 = vmatpush1.msra.mxu0 0.0
      %1174 = vmatprep.subr.mxu0 0.0
      %1175 = vmatpush1.msra.mxu0 0.0
      %1176 = vmatprep.subr.mxu0 0.0
      %1177 = vmatpush1.msra.mxu0 0.0
      %1178 = vmatprep.subr.mxu0 0.0
      %1179 = vmatpush1.msra.mxu0 0.0
      %1180 = vmatprep.subr.mxu0 0.0
      %1181 = vmatpush1.msra.mxu0 0.0
      %1182 = vmatprep.subr.mxu0 0.0
      %1183 = vmatpush1.msra.mxu0 0.0
      %1184 = vmatprep.subr.mxu0 0.0
      %1185 = vmatpush1.msra.mxu0 0.0
      %1186 = vmatprep.subr.mxu0 0.0
      %1187 = vmatpush1.msra.mxu0 0.0
      %1188 = vmatprep.subr.mxu0 0.0
      %1189 = vmatpush1.msra.mxu0 0.0
      %1190 = vmatprep.subr.mxu0 0.0
      %1191 = vmatpush1.msra.mxu0 0.0
      %1192 = vmatprep.subr.mxu0 0.0
      %1193 = vmatpush1.msra.mxu0 0.0
      %1194 = vmatprep.subr.mxu0 0.0
      %1195 = vmatpush1.msra.mxu0 0.0
      %1196 = vmatprep.subr.mxu0 0.0
      %1197 = vmatpush1.msra.mxu0 0.0
      %1198 = vmatprep.subr.mxu0 0.0
      %1199 = vmatpush1.msra.mxu0 0.0
      %1200 = vmatprep.subr.mxu0 0.0
      %1201 = vmatpush1.msra.mxu0 0.0
      %1202 = vmatprep.subr.mxu0 0.0
      %1203 = vmatpush1.msra.mxu0 0.0
      %1204 = vmatprep.subr.mxu0 0.0
      %1205 = vmatpush1.msra.mxu0 0.0
      %1206 = vmatprep.subr.mxu0 0.0
      %1207 = vmatpush1.msra.mxu0 0.0
      %1208 = vmatprep.subr.mxu0 0.0
      %1209 = vmatpush1.msra.mxu0 0.0
      %1210 = vmatprep.subr.mxu0 0.0
      %1211 = vmatpush1.msra.mxu0 0.0
      %1212 = vmatprep.subr.mxu0 0.0
      %1213 = vmatpush1.msra.mxu0 0.0
      %1214 = vmatprep.subr.mxu0 0.0
      %1215 = vmatpush1.msra.mxu0 0.0
      %1216 = vmatprep.mubr.f32.mxu0 0.0
      %v1217 = vand.u32 %v171, 4294901760
      %1218 = vmatmul.mubr.f32.gmra.mrb[0].mxu0 %v1217
      %v1219 = vpop.f32.mrb[0].mxu0
      %v1220 = vadd.f32 %v1058, %v1219
      %v1221 = vpop.f32.mrb[0].mxu0
      %1222 = vmatprep.mubr.f32.mxu0 0.0
      %v1223 = vand.u32 %v174, 4294901760
      %1224 = vmatmul.mubr.f32.gmra.mrb[0].mxu0 %v1223
      %v1225 = vpop.f32.mrb[0].mxu0
      %v1226 = vadd.f32 %v1064, %v1225
      %v1227 = vpop.f32.mrb[0].mxu0
      %1228 = vmatprep.mubr.f32.mxu0 0.0
      %v1229 = vand.u32 %v177, 4294901760
      %1230 = vmatmul.mubr.f32.gmra.mrb[0].mxu0 %v1229
      %v1231 = vpop.f32.mrb[0].mxu0
      %v1232 = vadd.f32 %v1070, %v1231
      %v1233 = vpop.f32.mrb[0].mxu0
      %1234 = vmatprep.mubr.f32.mxu0 0.0
      %v1235 = vand.u32 %v180, 4294901760
      %1236 = vmatmul.mubr.f32.gmra.mrb[0].mxu0 %v1235
      %v1237 = vpop.f32.mrb[0].mxu0
      %v1238 = vadd.f32 %v1076, %v1237
      %v1239 = vpop.f32.mrb[0].mxu0
      %1240 = vmatprep.mubr.f32.mxu0 0.0
      %v1241 = vand.u32 %v183, 4294901760
      %1242 = vmatmul.mubr.f32.gmra.mrb[0].mxu0 %v1241
      %v1243 = vpop.f32.mrb[0].mxu0
      %v1244 = vadd.f32 %v1082, %v1243
      %v1245 = vpop.f32.mrb[0].mxu0
      %1246 = vmatprep.mubr.f32.mxu0 0.0
      %v1247 = vand.u32 %v186, 4294901760
      %1248 = vmatmul.mubr.f32.gmra.mrb[0].mxu0 %v1247
      %v1249 = vpop.f32.mrb[0].mxu0
      %v1250 = vadd.f32 %v1088, %v1249
      %v1251 = vpop.f32.mrb[0].mxu0
      %1252 = vmatprep.mubr.f32.mxu0 0.0
      %v1253 = vand.u32 %v189, 4294901760
      %1254 = vmatmul.mubr.f32.gmra.mrb[0].mxu0 %v1253
      %v1255 = vpop.f32.mrb[0].mxu0
      %v1256 = vadd.f32 %v1094, %v1255
      %v1257 = vpop.f32.mrb[0].mxu0
      %1258 = vmatprep.mubr.f32.mxu0 0.0
      %v1259 = vand.u32 %v192, 4294901760
      %1260 = vmatmul.mubr.f32.gmra.mrb[0].mxu0 %v1259
      %v1261 = vpop.f32.mrb[0].mxu0
      %v1262 = vadd.f32 %v1100, %v1261
      %v1263 = vpop.f32.mrb[0].mxu0
      %1264 = vmatprep.mubr.f32.mxu0 0.0
      %v1265 = vand.u32 %v195, 4294901760
      %1266 = vmatmul.mubr.f32.gmra.mrb[0].mxu0 %v1265
      %v1267 = vpop.f32.mrb[0].mxu0
      %v1268 = vadd.f32 %v1106, %v1267
      %v1269 = vpop.f32.mrb[0].mxu0
      %1270 = vmatprep.mubr.f32.mxu0 0.0
      %v1271 = vand.u32 %v198, 4294901760
      %1272 = vmatmul.mubr.f32.gmra.mrb[0].mxu0 %v1271
      %v1273 = vpop.f32.mrb[0].mxu0
      %v1274 = vadd.f32 %v1112, %v1273
      %v1275 = vpop.f32.mrb[0].mxu0
      %1276 = vmatprep.mubr.f32.mxu0 0.0
      %v1277 = vand.u32 %v201, 4294901760
      %1278 = vmatmul.mubr.f32.gmra.mrb[0].mxu0 %v1277
      %v1279 = vpop.f32.mrb[0].mxu0
      %v1280 = vadd.f32 %v1118, %v1279
      %v1281 = vpop.f32.mrb[0].mxu0
      %1282 = vmatprep.mubr.f32.mxu0 0.0
      %v1283 = vand.u32 %v204, 4294901760
      %1284 = vmatmul.mubr.f32.gmra.mrb[0].mxu0 %v1283
      %v1285 = vpop.f32.mrb[0].mxu0
      %v1286 = vadd.f32 %v1124, %v1285
      %v1287 = vpop.f32.mrb[0].mxu0
      %1288 = vmatprep.mubr.f32.mxu0 0.0
      %v1289 = vand.u32 %v207, 4294901760
      %1290 = vmatmul.mubr.f32.gmra.mrb[0].mxu0 %v1289
      %v1291 = vpop.f32.mrb[0].mxu0
      %v1292 = vadd.f32 %v1130, %v1291
      %v1293 = vpop.f32.mrb[0].mxu0
      %1294 = vmatprep.mubr.f32.mxu0 0.0
      %v1295 = vand.u32 %v210, 4294901760
      %1296 = vmatmul.mubr.f32.gmra.mrb[0].mxu0 %v1295
      %v1297 = vpop.f32.mrb[0].mxu0
      %v1298 = vadd.f32 %v1136, %v1297
      %v1299 = vpop.f32.mrb[0].mxu0
      %1300 = vmatprep.mubr.f32.mxu0 0.0
      %v1301 = vand.u32 %v213, 4294901760
      %1302 = vmatmul.mubr.f32.gmra.mrb[0].mxu0 %v1301
      %v1303 = vpop.f32.mrb[0].mxu0
      %v1304 = vadd.f32 %v1142, %v1303
      %v1305 = vpop.f32.mrb[0].mxu0
      %1306 = vmatprep.mubr.f32.mxu0 0.0
      %v1307 = vand.u32 %v216, 4294901760
      %1308 = vmatmul.mubr.f32.gmra.mrb[0].mxu0 %v1307
      %v1309 = vpop.f32.mrb[0].mxu0
      %v1310 = vadd.f32 %v1148, %v1309
      %v1311 = vpop.f32.mrb[0].mxu0
      %1312 = vdwg.mxu0
      %v1313 = vand.u32 2147483647, %v1220
      %vm1314 = vcmp.le.f32.partialorder %v1313, 0.7853982
      %vm1315 = vcmp.lt.s32.totalorder %v1220, 0
      %v1316 = vand.u32 %v1220, 2139095040
      %v1317 = vshrl.u32 %v1316, 23
      %v1318 = vsub.s32 %v1317, 127
      %v1319 = vand.u32 2147483647, %v1220
      %v1320 = vand.u32 %v1319, 8388607
      %v1321 = vor.u32 %v1320, 8388608
      %v1322 = vsub.s32 0, %v1321
      %v1323 = vadd.s32 %v1318, 1
      %vm1324 = vcmp.gt.s32.totalorder %v1323, 0
      %v1325 = vsel %vm1324, %v1323, 0
      %v1326 = vshrl.u32 %v1325, 5
      %v1327 = vand.u32 %v1325, 31
      %v1328 = vsub.s32 32, %v1327
      %v1329 = vshrl.u32 683565275, %v1328
      %v1330 = vshll.u32 683565275, %v1327
      %v1331 = vshrl.u32 2475754826, %v1328
      %v1332 = vor.u32 %v1330, %v1331
      %v1333 = vshll.u32 2475754826, %v1327
      %v1334 = vshrl.u32 2131351028, %v1328
      %v1335 = vor.u32 %v1333, %v1334
      %v1336 = vshll.u32 2131351028, %v1327
      %v1337 = vshrl.u32 2102212464, %v1328
      %v1338 = vor.u32 %v1336, %v1337
      %v1339 = vshll.u32 2102212464, %v1327
      %v1340 = vshrl.u32 920167782, %v1328
      %v1341 = vor.u32 %v1339, %v1340
      %v1342 = vshll.u32 920167782, %v1327
      %v1343 = vshrl.u32 1326507024, %v1328
      %v1344 = vor.u32 %v1342, %v1343
      %vm1345 = vcmp.lt.s32.totalorder %v1326, 1
      %vm1346 = vcmp.lt.s32.totalorder %v1326, 2
      %vm1347 = vcmp.lt.s32.totalorder %v1326, 3
      %vm1348 = vcmp.lt.s32.totalorder %v1326, 4
      %v1349 = vsel %vm1345, %v1329, %v1332
      %v1350 = vsel %vm1348, %v1338, 2102212464
      %v1351 = vsel %vm1347, %v1335, %v1350
      %v1352 = vsel %vm1346, %v1349, %v1351
      %v1353 = vsel %vm1345, %v1332, %v1335
      %v1354 = vsel %vm1348, %v1341, 920167782
      %v1355 = vsel %vm1347, %v1338, %v1354
      %v1356 = vsel %vm1346, %v1353, %v1355
      %v1357 = vsel %vm1345, %v1335, %v1338
      %v1358 = vsel %vm1348, %v1344, 1326507024
      %v1359 = vsel %vm1347, %v1341, %v1358
      %v1360 = vsel %vm1346, %v1357, %v1359
      %v1361 = vshll.u32 %v1321, 8
      %v1362 = vmul.u32.u64.compose %v1361, %v1360
      %v1363 = vextract.low.u32 %v1362
      %v1364 = vextract.high.u32 %v1362
      %v1365 = vmul.u32.u64.compose %v1361, %v1356
      %v1366 = vextract.low.u32 %v1365
      %v1367 = vextract.high.u32 %v1365
      %v1368 = vmul.u32 %v1361, %v1352
      %v1369 = vadd.s32 %v1364, %v1366
      %vm1370 = vc.u32 %v1364, %v1366
      %v1371 = vadd.s32 %v1367, 1
      %v1372 = vsel %vm1370, %v1371, %v1367
      %v1373 = vadd.s32 %v1368, %v1372
      %v1374 = vadd.s32 %v1373, 536870912
      %v1375 = vshrl.u32 %v1374, 30
      %v1376 = vshll.u32 %v1375, 30
      %v1377 = vsub.s32 %v1373, %v1376
      %vm1378 = vcmp.lt.s32.totalorder %v1377, 0
      %v1379 = vsub.s32 0, %v1377
      %v1380 = vsel %vm1378, %v1379, %v1377
      %v1381 = vclz %v1380
      %v1382 = vsub.s32 %v1381, 2
      %vm1383 = vcmp.gt.s32.totalorder 0, %v1382
      %v1384 = vsel %vm1383, 0, %v1382
      %v1385 = vsub.s32 32, %v1384
      %v1386 = vshll.u32 %v1377, %v1384
      %v1387 = vshrl.u32 %v1369, %v1385
      %v1388 = vor.u32 %v1386, %v1387
      %v1389 = vsub.s32 4294967266, %v1384
      %v1390 = vadd.s32 %v1389, 127
      %v1391 = vshll.u32 %v1390, 23
      %v1392 = vor.u32 4788187, %v1391
      %v1393 = vand.u32 2147483647, %v1392
      %v1395 = vcvt.s32.f32 %v1388
      %v1396 = vmul.f32 %v1395, %v1393
      %v1397 = vxor.u32 %v1396, 2147483648
      %v1398 = vsel %vm1315, %v1397, %v1396
      %v1399 = vsub.s32 4, %v1375
      %v1400 = vsel %vm1315, %v1399, %v1375
      %v1401 = vsel %vm1314, %v1220, %v1398
      %v1402 = vsel %vm1314, 0, %v1400
      %v1403 = vcosq.f32.pop %v1401
      %v1404 = vsinq.f32.pop %v1401
      %vm1405 = vweird.f32 %v1220
      %v1406 = vadd.s32 %v1402, 3
      %v1407 = vand.u32 %v1406, 3
      %vm1408 = vcmp.lt.s32.totalorder %v1407, 2
      %vm1409 = vcmp.eq.s32.totalorder %v1407, 0
      %v1410 = vxor.u32 %v1404, 2147483648
      %v1411 = vsel %vm1409, %v1403, %v1410
      %vm1412 = vcmp.eq.s32.totalorder %v1407, 2
      %v1413 = vxor.u32 %v1403, 2147483648
      %v1414 = vsel %vm1412, %v1413, %v1404
      %v1415 = vsel %vm1408, %v1411, %v1414
      %v1416 = vsel %vm1405, nan, %v1415
      %v1417 = vand.u32 2147483647, %v1226
      %vm1418 = vcmp.le.f32.partialorder %v1417, 0.7853982
      %vm1419 = vcmp.lt.s32.totalorder %v1226, 0
      %v1420 = vand.u32 %v1226, 2139095040
      %v1421 = vshrl.u32 %v1420, 23
      %v1422 = vsub.s32 %v1421, 127
      %v1423 = vand.u32 2147483647, %v1226
      %v1424 = vand.u32 %v1423, 8388607
      %v1425 = vor.u32 %v1424, 8388608
      %v1426 = vsub.s32 0, %v1425
      %v1427 = vadd.s32 %v1422, 1
      %vm1428 = vcmp.gt.s32.totalorder %v1427, 0
      %v1429 = vsel %vm1428, %v1427, 0
      %v1430 = vshrl.u32 %v1429, 5
      %v1431 = vand.u32 %v1429, 31
      %v1432 = vsub.s32 32, %v1431
      %v1433 = vshrl.u32 683565275, %v1432
      %v1434 = vshll.u32 683565275, %v1431
      %v1435 = vshrl.u32 2475754826, %v1432
      %v1436 = vor.u32 %v1434, %v1435
      %v1437 = vshll.u32 2475754826, %v1431
      %v1438 = vshrl.u32 2131351028, %v1432
      %v1439 = vor.u32 %v1437, %v1438
      %v1440 = vshll.u32 2131351028, %v1431
      %v1441 = vshrl.u32 2102212464, %v1432
      %v1442 = vor.u32 %v1440, %v1441
      %v1443 = vshll.u32 2102212464, %v1431
      %v1444 = vshrl.u32 920167782, %v1432
      %v1445 = vor.u32 %v1443, %v1444
      %v1446 = vshll.u32 920167782, %v1431
      %v1447 = vshrl.u32 1326507024, %v1432
      %v1448 = vor.u32 %v1446, %v1447
      %vm1449 = vcmp.lt.s32.totalorder %v1430, 1
      %vm1450 = vcmp.lt.s32.totalorder %v1430, 2
      %vm1451 = vcmp.lt.s32.totalorder %v1430, 3
      %vm1452 = vcmp.lt.s32.totalorder %v1430, 4
      %v1453 = vsel %vm1449, %v1433, %v1436
      %v1454 = vsel %vm1452, %v1442, 2102212464
      %v1455 = vsel %vm1451, %v1439, %v1454
      %v1456 = vsel %vm1450, %v1453, %v1455
      %v1457 = vsel %vm1449, %v1436, %v1439
      %v1458 = vsel %vm1452, %v1445, 920167782
      %v1459 = vsel %vm1451, %v1442, %v1458
      %v1460 = vsel %vm1450, %v1457, %v1459
      %v1461 = vsel %vm1449, %v1439, %v1442
      %v1462 = vsel %vm1452, %v1448, 1326507024
      %v1463 = vsel %vm1451, %v1445, %v1462
      %v1464 = vsel %vm1450, %v1461, %v1463
      %v1465 = vshll.u32 %v1425, 8
      %v1466 = vmul.u32.u64.compose %v1465, %v1464
      %v1467 = vextract.low.u32 %v1466
      %v1468 = vextract.high.u32 %v1466
      %v1469 = vmul.u32.u64.compose %v1465, %v1460
      %v1470 = vextract.low.u32 %v1469
      %v1471 = vextract.high.u32 %v1469
      %v1472 = vmul.u32 %v1465, %v1456
      %v1473 = vadd.s32 %v1468, %v1470
      %vm1474 = vc.u32 %v1468, %v1470
      %v1475 = vadd.s32 %v1471, 1
      %v1476 = vsel %vm1474, %v1475, %v1471
      %v1477 = vadd.s32 %v1472, %v1476
      %v1478 = vadd.s32 %v1477, 536870912
      %v1479 = vshrl.u32 %v1478, 30
      %v1480 = vshll.u32 %v1479, 30
      %v1481 = vsub.s32 %v1477, %v1480
      %vm1482 = vcmp.lt.s32.totalorder %v1481, 0
      %v1483 = vsub.s32 0, %v1481
      %v1484 = vsel %vm1482, %v1483, %v1481
      %v1485 = vclz %v1484
      %v1486 = vsub.s32 %v1485, 2
      %vm1487 = vcmp.gt.s32.totalorder 0, %v1486
      %v1488 = vsel %vm1487, 0, %v1486
      %v1489 = vsub.s32 32, %v1488
      %v1490 = vshll.u32 %v1481, %v1488
      %v1491 = vshrl.u32 %v1473, %v1489
      %v1492 = vor.u32 %v1490, %v1491
      %v1493 = vsub.s32 4294967266, %v1488
      %v1494 = vadd.s32 %v1493, 127
      %v1495 = vshll.u32 %v1494, 23
      %v1496 = vor.u32 4788187, %v1495
      %v1497 = vand.u32 2147483647, %v1496
      %v1499 = vcvt.s32.f32 %v1492
      %v1500 = vmul.f32 %v1499, %v1497
      %v1501 = vxor.u32 %v1500, 2147483648
      %v1502 = vsel %vm1419, %v1501, %v1500
      %v1503 = vsub.s32 4, %v1479
      %v1504 = vsel %vm1419, %v1503, %v1479
      %v1505 = vsel %vm1418, %v1226, %v1502
      %v1506 = vsel %vm1418, 0, %v1504
      %v1507 = vcosq.f32.pop %v1505
      %v1508 = vsinq.f32.pop %v1505
      %vm1509 = vweird.f32 %v1226
      %v1510 = vadd.s32 %v1506, 3
      %v1511 = vand.u32 %v1510, 3
      %vm1512 = vcmp.lt.s32.totalorder %v1511, 2
      %vm1513 = vcmp.eq.s32.totalorder %v1511, 0
      %v1514 = vxor.u32 %v1508, 2147483648
      %v1515 = vsel %vm1513, %v1507, %v1514
      %vm1516 = vcmp.eq.s32.totalorder %v1511, 2
      %v1517 = vxor.u32 %v1507, 2147483648
      %v1518 = vsel %vm1516, %v1517, %v1508
      %v1519 = vsel %vm1512, %v1515, %v1518
      %v1520 = vsel %vm1509, nan, %v1519
      %v1521 = vand.u32 2147483647, %v1232
      %vm1522 = vcmp.le.f32.partialorder %v1521, 0.7853982
      %vm1523 = vcmp.lt.s32.totalorder %v1232, 0
      %v1524 = vand.u32 %v1232, 2139095040
      %v1525 = vshrl.u32 %v1524, 23
      %v1526 = vsub.s32 %v1525, 127
      %v1527 = vand.u32 2147483647, %v1232
      %v1528 = vand.u32 %v1527, 8388607
      %v1529 = vor.u32 %v1528, 8388608
      %v1530 = vsub.s32 0, %v1529
      %v1531 = vadd.s32 %v1526, 1
      %vm1532 = vcmp.gt.s32.totalorder %v1531, 0
      %v1533 = vsel %vm1532, %v1531, 0
      %v1534 = vshrl.u32 %v1533, 5
      %v1535 = vand.u32 %v1533, 31
      %v1536 = vsub.s32 32, %v1535
      %v1537 = vshrl.u32 683565275, %v1536
      %v1538 = vshll.u32 683565275, %v1535
      %v1539 = vshrl.u32 2475754826, %v1536
      %v1540 = vor.u32 %v1538, %v1539
      %v1541 = vshll.u32 2475754826, %v1535
      %v1542 = vshrl.u32 2131351028, %v1536
      %v1543 = vor.u32 %v1541, %v1542
      %v1544 = vshll.u32 2131351028, %v1535
      %v1545 = vshrl.u32 2102212464, %v1536
      %v1546 = vor.u32 %v1544, %v1545
      %v1547 = vshll.u32 2102212464, %v1535
      %v1548 = vshrl.u32 920167782, %v1536
      %v1549 = vor.u32 %v1547, %v1548
      %v1550 = vshll.u32 920167782, %v1535
      %v1551 = vshrl.u32 1326507024, %v1536
      %v1552 = vor.u32 %v1550, %v1551
      %vm1553 = vcmp.lt.s32.totalorder %v1534, 1
      %vm1554 = vcmp.lt.s32.totalorder %v1534, 2
      %vm1555 = vcmp.lt.s32.totalorder %v1534, 3
      %vm1556 = vcmp.lt.s32.totalorder %v1534, 4
      %v1557 = vsel %vm1553, %v1537, %v1540
      %v1558 = vsel %vm1556, %v1546, 2102212464
      %v1559 = vsel %vm1555, %v1543, %v1558
      %v1560 = vsel %vm1554, %v1557, %v1559
      %v1561 = vsel %vm1553, %v1540, %v1543
      %v1562 = vsel %vm1556, %v1549, 920167782
      %v1563 = vsel %vm1555, %v1546, %v1562
      %v1564 = vsel %vm1554, %v1561, %v1563
      %v1565 = vsel %vm1553, %v1543, %v1546
      %v1566 = vsel %vm1556, %v1552, 1326507024
      %v1567 = vsel %vm1555, %v1549, %v1566
      %v1568 = vsel %vm1554, %v1565, %v1567
      %v1569 = vshll.u32 %v1529, 8
      %v1570 = vmul.u32.u64.compose %v1569, %v1568
      %v1571 = vextract.low.u32 %v1570
      %v1572 = vextract.high.u32 %v1570
      %v1573 = vmul.u32.u64.compose %v1569, %v1564
      %v1574 = vextract.low.u32 %v1573
      %v1575 = vextract.high.u32 %v1573
      %v1576 = vmul.u32 %v1569, %v1560
      %v1577 = vadd.s32 %v1572, %v1574
      %vm1578 = vc.u32 %v1572, %v1574
      %v1579 = vadd.s32 %v1575, 1
      %v1580 = vsel %vm1578, %v1579, %v1575
      %v1581 = vadd.s32 %v1576, %v1580
      %v1582 = vadd.s32 %v1581, 536870912
      %v1583 = vshrl.u32 %v1582, 30
      %v1584 = vshll.u32 %v1583, 30
      %v1585 = vsub.s32 %v1581, %v1584
      %vm1586 = vcmp.lt.s32.totalorder %v1585, 0
      %v1587 = vsub.s32 0, %v1585
      %v1588 = vsel %vm1586, %v1587, %v1585
      %v1589 = vclz %v1588
      %v1590 = vsub.s32 %v1589, 2
      %vm1591 = vcmp.gt.s32.totalorder 0, %v1590
      %v1592 = vsel %vm1591, 0, %v1590
      %v1593 = vsub.s32 32, %v1592
      %v1594 = vshll.u32 %v1585, %v1592
      %v1595 = vshrl.u32 %v1577, %v1593
      %v1596 = vor.u32 %v1594, %v1595
      %v1597 = vsub.s32 4294967266, %v1592
      %v1598 = vadd.s32 %v1597, 127
      %v1599 = vshll.u32 %v1598, 23
      %v1600 = vor.u32 4788187, %v1599
      %v1601 = vand.u32 2147483647, %v1600
      %v1603 = vcvt.s32.f32 %v1596
      %v1604 = vmul.f32 %v1603, %v1601
      %v1605 = vxor.u32 %v1604, 2147483648
      %v1606 = vsel %vm1523, %v1605, %v1604
      %v1607 = vsub.s32 4, %v1583
      %v1608 = vsel %vm1523, %v1607, %v1583
      %v1609 = vsel %vm1522, %v1232, %v1606
      %v1610 = vsel %vm1522, 0, %v1608
      %v1611 = vcosq.f32.pop %v1609
      %v1612 = vsinq.f32.pop %v1609
      %vm1613 = vweird.f32 %v1232
      %v1614 = vadd.s32 %v1610, 3
      %v1615 = vand.u32 %v1614, 3
      %vm1616 = vcmp.lt.s32.totalorder %v1615, 2
      %vm1617 = vcmp.eq.s32.totalorder %v1615, 0
      %v1618 = vxor.u32 %v1612, 2147483648
      %v1619 = vsel %vm1617, %v1611, %v1618
      %vm1620 = vcmp.eq.s32.totalorder %v1615, 2
      %v1621 = vxor.u32 %v1611, 2147483648
      %v1622 = vsel %vm1620, %v1621, %v1612
      %v1623 = vsel %vm1616, %v1619, %v1622
      %v1624 = vsel %vm1613, nan, %v1623
      %v1625 = vand.u32 2147483647, %v1238
      %vm1626 = vcmp.le.f32.partialorder %v1625, 0.7853982
      %vm1627 = vcmp.lt.s32.totalorder %v1238, 0
      %v1628 = vand.u32 %v1238, 2139095040
      %v1629 = vshrl.u32 %v1628, 23
      %v1630 = vsub.s32 %v1629, 127
      %v1631 = vand.u32 2147483647, %v1238
      %v1632 = vand.u32 %v1631, 8388607
      %v1633 = vor.u32 %v1632, 8388608
      %v1634 = vsub.s32 0, %v1633
      %v1635 = vadd.s32 %v1630, 1
      %vm1636 = vcmp.gt.s32.totalorder %v1635, 0
      %v1637 = vsel %vm1636, %v1635, 0
      %v1638 = vshrl.u32 %v1637, 5
      %v1639 = vand.u32 %v1637, 31
      %v1640 = vsub.s32 32, %v1639
      %v1641 = vshrl.u32 683565275, %v1640
      %v1642 = vshll.u32 683565275, %v1639
      %v1643 = vshrl.u32 2475754826, %v1640
      %v1644 = vor.u32 %v1642, %v1643
      %v1645 = vshll.u32 2475754826, %v1639
      %v1646 = vshrl.u32 2131351028, %v1640
      %v1647 = vor.u32 %v1645, %v1646
      %v1648 = vshll.u32 2131351028, %v1639
      %v1649 = vshrl.u32 2102212464, %v1640
      %v1650 = vor.u32 %v1648, %v1649
      %v1651 = vshll.u32 2102212464, %v1639
      %v1652 = vshrl.u32 920167782, %v1640
      %v1653 = vor.u32 %v1651, %v1652
      %v1654 = vshll.u32 920167782, %v1639
      %v1655 = vshrl.u32 1326507024, %v1640
      %v1656 = vor.u32 %v1654, %v1655
      %vm1657 = vcmp.lt.s32.totalorder %v1638, 1
      %vm1658 = vcmp.lt.s32.totalorder %v1638, 2
      %vm1659 = vcmp.lt.s32.totalorder %v1638, 3
      %vm1660 = vcmp.lt.s32.totalorder %v1638, 4
      %v1661 = vsel %vm1657, %v1641, %v1644
      %v1662 = vsel %vm1660, %v1650, 2102212464
      %v1663 = vsel %vm1659, %v1647, %v1662
      %v1664 = vsel %vm1658, %v1661, %v1663
      %v1665 = vsel %vm1657, %v1644, %v1647
      %v1666 = vsel %vm1660, %v1653, 920167782
      %v1667 = vsel %vm1659, %v1650, %v1666
      %v1668 = vsel %vm1658, %v1665, %v1667
      %v1669 = vsel %vm1657, %v1647, %v1650
      %v1670 = vsel %vm1660, %v1656, 1326507024
      %v1671 = vsel %vm1659, %v1653, %v1670
      %v1672 = vsel %vm1658, %v1669, %v1671
      %v1673 = vshll.u32 %v1633, 8
      %v1674 = vmul.u32.u64.compose %v1673, %v1672
      %v1675 = vextract.low.u32 %v1674
      %v1676 = vextract.high.u32 %v1674
      %v1677 = vmul.u32.u64.compose %v1673, %v1668
      %v1678 = vextract.low.u32 %v1677
      %v1679 = vextract.high.u32 %v1677
      %v1680 = vmul.u32 %v1673, %v1664
      %v1681 = vadd.s32 %v1676, %v1678
      %vm1682 = vc.u32 %v1676, %v1678
      %v1683 = vadd.s32 %v1679, 1
      %v1684 = vsel %vm1682, %v1683, %v1679
      %v1685 = vadd.s32 %v1680, %v1684
      %v1686 = vadd.s32 %v1685, 536870912
      %v1687 = vshrl.u32 %v1686, 30
      %v1688 = vshll.u32 %v1687, 30
      %v1689 = vsub.s32 %v1685, %v1688
      %vm1690 = vcmp.lt.s32.totalorder %v1689, 0
      %v1691 = vsub.s32 0, %v1689
      %v1692 = vsel %vm1690, %v1691, %v1689
      %v1693 = vclz %v1692
      %v1694 = vsub.s32 %v1693, 2
      %vm1695 = vcmp.gt.s32.totalorder 0, %v1694
      %v1696 = vsel %vm1695, 0, %v1694
      %v1697 = vsub.s32 32, %v1696
      %v1698 = vshll.u32 %v1689, %v1696
      %v1699 = vshrl.u32 %v1681, %v1697
      %v1700 = vor.u32 %v1698, %v1699
      %v1701 = vsub.s32 4294967266, %v1696
      %v1702 = vadd.s32 %v1701, 127
      %v1703 = vshll.u32 %v1702, 23
      %v1704 = vor.u32 4788187, %v1703
      %v1705 = vand.u32 2147483647, %v1704
      %v1707 = vcvt.s32.f32 %v1700
      %v1708 = vmul.f32 %v1707, %v1705
      %v1709 = vxor.u32 %v1708, 2147483648
      %v1710 = vsel %vm1627, %v1709, %v1708
      %v1711 = vsub.s32 4, %v1687
      %v1712 = vsel %vm1627, %v1711, %v1687
      %v1713 = vsel %vm1626, %v1238, %v1710
      %v1714 = vsel %vm1626, 0, %v1712
      %v1715 = vcosq.f32.pop %v1713
      %v1716 = vsinq.f32.pop %v1713
      %vm1717 = vweird.f32 %v1238
      %v1718 = vadd.s32 %v1714, 3
      %v1719 = vand.u32 %v1718, 3
      %vm1720 = vcmp.lt.s32.totalorder %v1719, 2
      %vm1721 = vcmp.eq.s32.totalorder %v1719, 0
      %v1722 = vxor.u32 %v1716, 2147483648
      %v1723 = vsel %vm1721, %v1715, %v1722
      %vm1724 = vcmp.eq.s32.totalorder %v1719, 2
      %v1725 = vxor.u32 %v1715, 2147483648
      %v1726 = vsel %vm1724, %v1725, %v1716
      %v1727 = vsel %vm1720, %v1723, %v1726
      %v1728 = vsel %vm1717, nan, %v1727
      %v1729 = vand.u32 2147483647, %v1244
      %vm1730 = vcmp.le.f32.partialorder %v1729, 0.7853982
      %vm1731 = vcmp.lt.s32.totalorder %v1244, 0
      %v1732 = vand.u32 %v1244, 2139095040
      %v1733 = vshrl.u32 %v1732, 23
      %v1734 = vsub.s32 %v1733, 127
      %v1735 = vand.u32 2147483647, %v1244
      %v1736 = vand.u32 %v1735, 8388607
      %v1737 = vor.u32 %v1736, 8388608
      %v1738 = vsub.s32 0, %v1737
      %v1739 = vadd.s32 %v1734, 1
      %vm1740 = vcmp.gt.s32.totalorder %v1739, 0
      %v1741 = vsel %vm1740, %v1739, 0
      %v1742 = vshrl.u32 %v1741, 5
      %v1743 = vand.u32 %v1741, 31
      %v1744 = vsub.s32 32, %v1743
      %v1745 = vshrl.u32 683565275, %v1744
      %v1746 = vshll.u32 683565275, %v1743
      %v1747 = vshrl.u32 2475754826, %v1744
      %v1748 = vor.u32 %v1746, %v1747
      %v1749 = vshll.u32 2475754826, %v1743
      %v1750 = vshrl.u32 2131351028, %v1744
      %v1751 = vor.u32 %v1749, %v1750
      %v1752 = vshll.u32 2131351028, %v1743
      %v1753 = vshrl.u32 2102212464, %v1744
      %v1754 = vor.u32 %v1752, %v1753
      %v1755 = vshll.u32 2102212464, %v1743
      %v1756 = vshrl.u32 920167782, %v1744
      %v1757 = vor.u32 %v1755, %v1756
      %v1758 = vshll.u32 920167782, %v1743
      %v1759 = vshrl.u32 1326507024, %v1744
      %v1760 = vor.u32 %v1758, %v1759
      %vm1761 = vcmp.lt.s32.totalorder %v1742, 1
      %vm1762 = vcmp.lt.s32.totalorder %v1742, 2
      %vm1763 = vcmp.lt.s32.totalorder %v1742, 3
      %vm1764 = vcmp.lt.s32.totalorder %v1742, 4
      %v1765 = vsel %vm1761, %v1745, %v1748
      %v1766 = vsel %vm1764, %v1754, 2102212464
      %v1767 = vsel %vm1763, %v1751, %v1766
      %v1768 = vsel %vm1762, %v1765, %v1767
      %v1769 = vsel %vm1761, %v1748, %v1751
      %v1770 = vsel %vm1764, %v1757, 920167782
      %v1771 = vsel %vm1763, %v1754, %v1770
      %v1772 = vsel %vm1762, %v1769, %v1771
      %v1773 = vsel %vm1761, %v1751, %v1754
      %v1774 = vsel %vm1764, %v1760, 1326507024
      %v1775 = vsel %vm1763, %v1757, %v1774
      %v1776 = vsel %vm1762, %v1773, %v1775
      %v1777 = vshll.u32 %v1737, 8
      %v1778 = vmul.u32.u64.compose %v1777, %v1776
      %v1779 = vextract.low.u32 %v1778
      %v1780 = vextract.high.u32 %v1778
      %v1781 = vmul.u32.u64.compose %v1777, %v1772
      %v1782 = vextract.low.u32 %v1781
      %v1783 = vextract.high.u32 %v1781
      %v1784 = vmul.u32 %v1777, %v1768
      %v1785 = vadd.s32 %v1780, %v1782
      %vm1786 = vc.u32 %v1780, %v1782
      %v1787 = vadd.s32 %v1783, 1
      %v1788 = vsel %vm1786, %v1787, %v1783
      %v1789 = vadd.s32 %v1784, %v1788
      %v1790 = vadd.s32 %v1789, 536870912
      %v1791 = vshrl.u32 %v1790, 30
      %v1792 = vshll.u32 %v1791, 30
      %v1793 = vsub.s32 %v1789, %v1792
      %vm1794 = vcmp.lt.s32.totalorder %v1793, 0
      %v1795 = vsub.s32 0, %v1793
      %v1796 = vsel %vm1794, %v1795, %v1793
      %v1797 = vclz %v1796
      %v1798 = vsub.s32 %v1797, 2
      %vm1799 = vcmp.gt.s32.totalorder 0, %v1798
      %v1800 = vsel %vm1799, 0, %v1798
      %v1801 = vsub.s32 32, %v1800
      %v1802 = vshll.u32 %v1793, %v1800
      %v1803 = vshrl.u32 %v1785, %v1801
      %v1804 = vor.u32 %v1802, %v1803
      %v1805 = vsub.s32 4294967266, %v1800
      %v1806 = vadd.s32 %v1805, 127
      %v1807 = vshll.u32 %v1806, 23
      %v1808 = vor.u32 4788187, %v1807
      %v1809 = vand.u32 2147483647, %v1808
      %v1811 = vcvt.s32.f32 %v1804
      %v1812 = vmul.f32 %v1811, %v1809
      %v1813 = vxor.u32 %v1812, 2147483648
      %v1814 = vsel %vm1731, %v1813, %v1812
      %v1815 = vsub.s32 4, %v1791
      %v1816 = vsel %vm1731, %v1815, %v1791
      %v1817 = vsel %vm1730, %v1244, %v1814
      %v1818 = vsel %vm1730, 0, %v1816
      %v1819 = vcosq.f32.pop %v1817
      %v1820 = vsinq.f32.pop %v1817
      %vm1821 = vweird.f32 %v1244
      %v1822 = vadd.s32 %v1818, 3
      %v1823 = vand.u32 %v1822, 3
      %vm1824 = vcmp.lt.s32.totalorder %v1823, 2
      %vm1825 = vcmp.eq.s32.totalorder %v1823, 0
      %v1826 = vxor.u32 %v1820, 2147483648
      %v1827 = vsel %vm1825, %v1819, %v1826
      %vm1828 = vcmp.eq.s32.totalorder %v1823, 2
      %v1829 = vxor.u32 %v1819, 2147483648
      %v1830 = vsel %vm1828, %v1829, %v1820
      %v1831 = vsel %vm1824, %v1827, %v1830
      %v1832 = vsel %vm1821, nan, %v1831
      %v1833 = vand.u32 2147483647, %v1250
      %vm1834 = vcmp.le.f32.partialorder %v1833, 0.7853982
      %vm1835 = vcmp.lt.s32.totalorder %v1250, 0
      %v1836 = vand.u32 %v1250, 2139095040
      %v1837 = vshrl.u32 %v1836, 23
      %v1838 = vsub.s32 %v1837, 127
      %v1839 = vand.u32 2147483647, %v1250
      %v1840 = vand.u32 %v1839, 8388607
      %v1841 = vor.u32 %v1840, 8388608
      %v1842 = vsub.s32 0, %v1841
      %v1843 = vadd.s32 %v1838, 1
      %vm1844 = vcmp.gt.s32.totalorder %v1843, 0
      %v1845 = vsel %vm1844, %v1843, 0
      %v1846 = vshrl.u32 %v1845, 5
      %v1847 = vand.u32 %v1845, 31
      %v1848 = vsub.s32 32, %v1847
      %v1849 = vshrl.u32 683565275, %v1848
      %v1850 = vshll.u32 683565275, %v1847
      %v1851 = vshrl.u32 2475754826, %v1848
      %v1852 = vor.u32 %v1850, %v1851
      %v1853 = vshll.u32 2475754826, %v1847
      %v1854 = vshrl.u32 2131351028, %v1848
      %v1855 = vor.u32 %v1853, %v1854
      %v1856 = vshll.u32 2131351028, %v1847
      %v1857 = vshrl.u32 2102212464, %v1848
      %v1858 = vor.u32 %v1856, %v1857
      %v1859 = vshll.u32 2102212464, %v1847
      %v1860 = vshrl.u32 920167782, %v1848
      %v1861 = vor.u32 %v1859, %v1860
      %v1862 = vshll.u32 920167782, %v1847
      %v1863 = vshrl.u32 1326507024, %v1848
      %v1864 = vor.u32 %v1862, %v1863
      %vm1865 = vcmp.lt.s32.totalorder %v1846, 1
      %vm1866 = vcmp.lt.s32.totalorder %v1846, 2
      %vm1867 = vcmp.lt.s32.totalorder %v1846, 3
      %vm1868 = vcmp.lt.s32.totalorder %v1846, 4
      %v1869 = vsel %vm1865, %v1849, %v1852
      %v1870 = vsel %vm1868, %v1858, 2102212464
      %v1871 = vsel %vm1867, %v1855, %v1870
      %v1872 = vsel %vm1866, %v1869, %v1871
      %v1873 = vsel %vm1865, %v1852, %v1855
      %v1874 = vsel %vm1868, %v1861, 920167782
      %v1875 = vsel %vm1867, %v1858, %v1874
      %v1876 = vsel %vm1866, %v1873, %v1875
      %v1877 = vsel %vm1865, %v1855, %v1858
      %v1878 = vsel %vm1868, %v1864, 1326507024
      %v1879 = vsel %vm1867, %v1861, %v1878
      %v1880 = vsel %vm1866, %v1877, %v1879
      %v1881 = vshll.u32 %v1841, 8
      %v1882 = vmul.u32.u64.compose %v1881, %v1880
      %v1883 = vextract.low.u32 %v1882
      %v1884 = vextract.high.u32 %v1882
      %v1885 = vmul.u32.u64.compose %v1881, %v1876
      %v1886 = vextract.low.u32 %v1885
      %v1887 = vextract.high.u32 %v1885
      %v1888 = vmul.u32 %v1881, %v1872
      %v1889 = vadd.s32 %v1884, %v1886
      %vm1890 = vc.u32 %v1884, %v1886
      %v1891 = vadd.s32 %v1887, 1
      %v1892 = vsel %vm1890, %v1891, %v1887
      %v1893 = vadd.s32 %v1888, %v1892
      %v1894 = vadd.s32 %v1893, 536870912
      %v1895 = vshrl.u32 %v1894, 30
      %v1896 = vshll.u32 %v1895, 30
      %v1897 = vsub.s32 %v1893, %v1896
      %vm1898 = vcmp.lt.s32.totalorder %v1897, 0
      %v1899 = vsub.s32 0, %v1897
      %v1900 = vsel %vm1898, %v1899, %v1897
      %v1901 = vclz %v1900
      %v1902 = vsub.s32 %v1901, 2
      %vm1903 = vcmp.gt.s32.totalorder 0, %v1902
      %v1904 = vsel %vm1903, 0, %v1902
      %v1905 = vsub.s32 32, %v1904
      %v1906 = vshll.u32 %v1897, %v1904
      %v1907 = vshrl.u32 %v1889, %v1905
      %v1908 = vor.u32 %v1906, %v1907
      %v1909 = vsub.s32 4294967266, %v1904
      %v1910 = vadd.s32 %v1909, 127
      %v1911 = vshll.u32 %v1910, 23
      %v1912 = vor.u32 4788187, %v1911
      %v1913 = vand.u32 2147483647, %v1912
      %v1915 = vcvt.s32.f32 %v1908
      %v1916 = vmul.f32 %v1915, %v1913
      %v1917 = vxor.u32 %v1916, 2147483648
      %v1918 = vsel %vm1835, %v1917, %v1916
      %v1919 = vsub.s32 4, %v1895
      %v1920 = vsel %vm1835, %v1919, %v1895
      %v1921 = vsel %vm1834, %v1250, %v1918
      %v1922 = vsel %vm1834, 0, %v1920
      %v1923 = vcosq.f32.pop %v1921
      %v1924 = vsinq.f32.pop %v1921
      %vm1925 = vweird.f32 %v1250
      %v1926 = vadd.s32 %v1922, 3
      %v1927 = vand.u32 %v1926, 3
      %vm1928 = vcmp.lt.s32.totalorder %v1927, 2
      %vm1929 = vcmp.eq.s32.totalorder %v1927, 0
      %v1930 = vxor.u32 %v1924, 2147483648
      %v1931 = vsel %vm1929, %v1923, %v1930
      %vm1932 = vcmp.eq.s32.totalorder %v1927, 2
      %v1933 = vxor.u32 %v1923, 2147483648
      %v1934 = vsel %vm1932, %v1933, %v1924
      %v1935 = vsel %vm1928, %v1931, %v1934
      %v1936 = vsel %vm1925, nan, %v1935
      %v1937 = vand.u32 2147483647, %v1256
      %vm1938 = vcmp.le.f32.partialorder %v1937, 0.7853982
      %vm1939 = vcmp.lt.s32.totalorder %v1256, 0
      %v1940 = vand.u32 %v1256, 2139095040
      %v1941 = vshrl.u32 %v1940, 23
      %v1942 = vsub.s32 %v1941, 127
      %v1943 = vand.u32 2147483647, %v1256
      %v1944 = vand.u32 %v1943, 8388607
      %v1945 = vor.u32 %v1944, 8388608
      %v1946 = vsub.s32 0, %v1945
      %v1947 = vadd.s32 %v1942, 1
      %vm1948 = vcmp.gt.s32.totalorder %v1947, 0
      %v1949 = vsel %vm1948, %v1947, 0
      %v1950 = vshrl.u32 %v1949, 5
      %v1951 = vand.u32 %v1949, 31
      %v1952 = vsub.s32 32, %v1951
      %v1953 = vshrl.u32 683565275, %v1952
      %v1954 = vshll.u32 683565275, %v1951
      %v1955 = vshrl.u32 2475754826, %v1952
      %v1956 = vor.u32 %v1954, %v1955
      %v1957 = vshll.u32 2475754826, %v1951
      %v1958 = vshrl.u32 2131351028, %v1952
      %v1959 = vor.u32 %v1957, %v1958
      %v1960 = vshll.u32 2131351028, %v1951
      %v1961 = vshrl.u32 2102212464, %v1952
      %v1962 = vor.u32 %v1960, %v1961
      %v1963 = vshll.u32 2102212464, %v1951
      %v1964 = vshrl.u32 920167782, %v1952
      %v1965 = vor.u32 %v1963, %v1964
      %v1966 = vshll.u32 920167782, %v1951
      %v1967 = vshrl.u32 1326507024, %v1952
      %v1968 = vor.u32 %v1966, %v1967
      %vm1969 = vcmp.lt.s32.totalorder %v1950, 1
      %vm1970 = vcmp.lt.s32.totalorder %v1950, 2
      %vm1971 = vcmp.lt.s32.totalorder %v1950, 3
      %vm1972 = vcmp.lt.s32.totalorder %v1950, 4
      %v1973 = vsel %vm1969, %v1953, %v1956
      %v1974 = vsel %vm1972, %v1962, 2102212464
      %v1975 = vsel %vm1971, %v1959, %v1974
      %v1976 = vsel %vm1970, %v1973, %v1975
      %v1977 = vsel %vm1969, %v1956, %v1959
      %v1978 = vsel %vm1972, %v1965, 920167782
      %v1979 = vsel %vm1971, %v1962, %v1978
      %v1980 = vsel %vm1970, %v1977, %v1979
      %v1981 = vsel %vm1969, %v1959, %v1962
      %v1982 = vsel %vm1972, %v1968, 1326507024
      %v1983 = vsel %vm1971, %v1965, %v1982
      %v1984 = vsel %vm1970, %v1981, %v1983
      %v1985 = vshll.u32 %v1945, 8
      %v1986 = vmul.u32.u64.compose %v1985, %v1984
      %v1987 = vextract.low.u32 %v1986
      %v1988 = vextract.high.u32 %v1986
      %v1989 = vmul.u32.u64.compose %v1985, %v1980
      %v1990 = vextract.low.u32 %v1989
      %v1991 = vextract.high.u32 %v1989
      %v1992 = vmul.u32 %v1985, %v1976
      %v1993 = vadd.s32 %v1988, %v1990
      %vm1994 = vc.u32 %v1988, %v1990
      %v1995 = vadd.s32 %v1991, 1
      %v1996 = vsel %vm1994, %v1995, %v1991
      %v1997 = vadd.s32 %v1992, %v1996
      %v1998 = vadd.s32 %v1997, 536870912
      %v1999 = vshrl.u32 %v1998, 30
      %v2000 = vshll.u32 %v1999, 30
      %v2001 = vsub.s32 %v1997, %v2000
      %vm2002 = vcmp.lt.s32.totalorder %v2001, 0
      %v2003 = vsub.s32 0, %v2001
      %v2004 = vsel %vm2002, %v2003, %v2001
      %v2005 = vclz %v2004
      %v2006 = vsub.s32 %v2005, 2
      %vm2007 = vcmp.gt.s32.totalorder 0, %v2006
      %v2008 = vsel %vm2007, 0, %v2006
      %v2009 = vsub.s32 32, %v2008
      %v2010 = vshll.u32 %v2001, %v2008
      %v2011 = vshrl.u32 %v1993, %v2009
      %v2012 = vor.u32 %v2010, %v2011
      %v2013 = vsub.s32 4294967266, %v2008
      %v2014 = vadd.s32 %v2013, 127
      %v2015 = vshll.u32 %v2014, 23
      %v2016 = vor.u32 4788187, %v2015
      %v2017 = vand.u32 2147483647, %v2016
      %v2019 = vcvt.s32.f32 %v2012
      %v2020 = vmul.f32 %v2019, %v2017
      %v2021 = vxor.u32 %v2020, 2147483648
      %v2022 = vsel %vm1939, %v2021, %v2020
      %v2023 = vsub.s32 4, %v1999
      %v2024 = vsel %vm1939, %v2023, %v1999
      %v2025 = vsel %vm1938, %v1256, %v2022
      %v2026 = vsel %vm1938, 0, %v2024
      %v2027 = vcosq.f32.pop %v2025
      %v2028 = vsinq.f32.pop %v2025
      %vm2029 = vweird.f32 %v1256
      %v2030 = vadd.s32 %v2026, 3
      %v2031 = vand.u32 %v2030, 3
      %vm2032 = vcmp.lt.s32.totalorder %v2031, 2
      %vm2033 = vcmp.eq.s32.totalorder %v2031, 0
      %v2034 = vxor.u32 %v2028, 2147483648
      %v2035 = vsel %vm2033, %v2027, %v2034
      %vm2036 = vcmp.eq.s32.totalorder %v2031, 2
      %v2037 = vxor.u32 %v2027, 2147483648
      %v2038 = vsel %vm2036, %v2037, %v2028
      %v2039 = vsel %vm2032, %v2035, %v2038
      %v2040 = vsel %vm2029, nan, %v2039
      %v2041 = vand.u32 2147483647, %v1262
      %vm2042 = vcmp.le.f32.partialorder %v2041, 0.7853982
      %vm2043 = vcmp.lt.s32.totalorder %v1262, 0
      %v2044 = vand.u32 %v1262, 2139095040
      %v2045 = vshrl.u32 %v2044, 23
      %v2046 = vsub.s32 %v2045, 127
      %v2047 = vand.u32 2147483647, %v1262
      %v2048 = vand.u32 %v2047, 8388607
      %v2049 = vor.u32 %v2048, 8388608
      %v2050 = vsub.s32 0, %v2049
      %v2051 = vadd.s32 %v2046, 1
      %vm2052 = vcmp.gt.s32.totalorder %v2051, 0
      %v2053 = vsel %vm2052, %v2051, 0
      %v2054 = vshrl.u32 %v2053, 5
      %v2055 = vand.u32 %v2053, 31
      %v2056 = vsub.s32 32, %v2055
      %v2057 = vshrl.u32 683565275, %v2056
      %v2058 = vshll.u32 683565275, %v2055
      %v2059 = vshrl.u32 2475754826, %v2056
      %v2060 = vor.u32 %v2058, %v2059
      %v2061 = vshll.u32 2475754826, %v2055
      %v2062 = vshrl.u32 2131351028, %v2056
      %v2063 = vor.u32 %v2061, %v2062
      %v2064 = vshll.u32 2131351028, %v2055
      %v2065 = vshrl.u32 2102212464, %v2056
      %v2066 = vor.u32 %v2064, %v2065
      %v2067 = vshll.u32 2102212464, %v2055
      %v2068 = vshrl.u32 920167782, %v2056
      %v2069 = vor.u32 %v2067, %v2068
      %v2070 = vshll.u32 920167782, %v2055
      %v2071 = vshrl.u32 1326507024, %v2056
      %v2072 = vor.u32 %v2070, %v2071
      %vm2073 = vcmp.lt.s32.totalorder %v2054, 1
      %vm2074 = vcmp.lt.s32.totalorder %v2054, 2
      %vm2075 = vcmp.lt.s32.totalorder %v2054, 3
      %vm2076 = vcmp.lt.s32.totalorder %v2054, 4
      %v2077 = vsel %vm2073, %v2057, %v2060
      %v2078 = vsel %vm2076, %v2066, 2102212464
      %v2079 = vsel %vm2075, %v2063, %v2078
      %v2080 = vsel %vm2074, %v2077, %v2079
      %v2081 = vsel %vm2073, %v2060, %v2063
      %v2082 = vsel %vm2076, %v2069, 920167782
      %v2083 = vsel %vm2075, %v2066, %v2082
      %v2084 = vsel %vm2074, %v2081, %v2083
      %v2085 = vsel %vm2073, %v2063, %v2066
      %v2086 = vsel %vm2076, %v2072, 1326507024
      %v2087 = vsel %vm2075, %v2069, %v2086
      %v2088 = vsel %vm2074, %v2085, %v2087
      %v2089 = vshll.u32 %v2049, 8
      %v2090 = vmul.u32.u64.compose %v2089, %v2088
      %v2091 = vextract.low.u32 %v2090
      %v2092 = vextract.high.u32 %v2090
      %v2093 = vmul.u32.u64.compose %v2089, %v2084
      %v2094 = vextract.low.u32 %v2093
      %v2095 = vextract.high.u32 %v2093
      %v2096 = vmul.u32 %v2089, %v2080
      %v2097 = vadd.s32 %v2092, %v2094
      %vm2098 = vc.u32 %v2092, %v2094
      %v2099 = vadd.s32 %v2095, 1
      %v2100 = vsel %vm2098, %v2099, %v2095
      %v2101 = vadd.s32 %v2096, %v2100
      %v2102 = vadd.s32 %v2101, 536870912
      %v2103 = vshrl.u32 %v2102, 30
      %v2104 = vshll.u32 %v2103, 30
      %v2105 = vsub.s32 %v2101, %v2104
      %vm2106 = vcmp.lt.s32.totalorder %v2105, 0
      %v2107 = vsub.s32 0, %v2105
      %v2108 = vsel %vm2106, %v2107, %v2105
      %v2109 = vclz %v2108
      %v2110 = vsub.s32 %v2109, 2
      %vm2111 = vcmp.gt.s32.totalorder 0, %v2110
      %v2112 = vsel %vm2111, 0, %v2110
      %v2113 = vsub.s32 32, %v2112
      %v2114 = vshll.u32 %v2105, %v2112
      %v2115 = vshrl.u32 %v2097, %v2113
      %v2116 = vor.u32 %v2114, %v2115
      %v2117 = vsub.s32 4294967266, %v2112
      %v2118 = vadd.s32 %v2117, 127
      %v2119 = vshll.u32 %v2118, 23
      %v2120 = vor.u32 4788187, %v2119
      %v2121 = vand.u32 2147483647, %v2120
      %v2123 = vcvt.s32.f32 %v2116
      %v2124 = vmul.f32 %v2123, %v2121
      %v2125 = vxor.u32 %v2124, 2147483648
      %v2126 = vsel %vm2043, %v2125, %v2124
      %v2127 = vsub.s32 4, %v2103
      %v2128 = vsel %vm2043, %v2127, %v2103
      %v2129 = vsel %vm2042, %v1262, %v2126
      %v2130 = vsel %vm2042, 0, %v2128
      %v2131 = vcosq.f32.pop %v2129
      %v2132 = vsinq.f32.pop %v2129
      %vm2133 = vweird.f32 %v1262
      %v2134 = vadd.s32 %v2130, 3
      %v2135 = vand.u32 %v2134, 3
      %vm2136 = vcmp.lt.s32.totalorder %v2135, 2
      %vm2137 = vcmp.eq.s32.totalorder %v2135, 0
      %v2138 = vxor.u32 %v2132, 2147483648
      %v2139 = vsel %vm2137, %v2131, %v2138
      %vm2140 = vcmp.eq.s32.totalorder %v2135, 2
      %v2141 = vxor.u32 %v2131, 2147483648
      %v2142 = vsel %vm2140, %v2141, %v2132
      %v2143 = vsel %vm2136, %v2139, %v2142
      %v2144 = vsel %vm2133, nan, %v2143
      %v2145 = vand.u32 2147483647, %v1268
      %vm2146 = vcmp.le.f32.partialorder %v2145, 0.7853982
      %vm2147 = vcmp.lt.s32.totalorder %v1268, 0
      %v2148 = vand.u32 %v1268, 2139095040
      %v2149 = vshrl.u32 %v2148, 23
      %v2150 = vsub.s32 %v2149, 127
      %v2151 = vand.u32 2147483647, %v1268
      %v2152 = vand.u32 %v2151, 8388607
      %v2153 = vor.u32 %v2152, 8388608
      %v2154 = vsub.s32 0, %v2153
      %v2155 = vadd.s32 %v2150, 1
      %vm2156 = vcmp.gt.s32.totalorder %v2155, 0
      %v2157 = vsel %vm2156, %v2155, 0
      %v2158 = vshrl.u32 %v2157, 5
      %v2159 = vand.u32 %v2157, 31
      %v2160 = vsub.s32 32, %v2159
      %v2161 = vshrl.u32 683565275, %v2160
      %v2162 = vshll.u32 683565275, %v2159
      %v2163 = vshrl.u32 2475754826, %v2160
      %v2164 = vor.u32 %v2162, %v2163
      %v2165 = vshll.u32 2475754826, %v2159
      %v2166 = vshrl.u32 2131351028, %v2160
      %v2167 = vor.u32 %v2165, %v2166
      %v2168 = vshll.u32 2131351028, %v2159
      %v2169 = vshrl.u32 2102212464, %v2160
      %v2170 = vor.u32 %v2168, %v2169
      %v2171 = vshll.u32 2102212464, %v2159
      %v2172 = vshrl.u32 920167782, %v2160
      %v2173 = vor.u32 %v2171, %v2172
      %v2174 = vshll.u32 920167782, %v2159
      %v2175 = vshrl.u32 1326507024, %v2160
      %v2176 = vor.u32 %v2174, %v2175
      %vm2177 = vcmp.lt.s32.totalorder %v2158, 1
      %vm2178 = vcmp.lt.s32.totalorder %v2158, 2
      %vm2179 = vcmp.lt.s32.totalorder %v2158, 3
      %vm2180 = vcmp.lt.s32.totalorder %v2158, 4
      %v2181 = vsel %vm2177, %v2161, %v2164
      %v2182 = vsel %vm2180, %v2170, 2102212464
      %v2183 = vsel %vm2179, %v2167, %v2182
      %v2184 = vsel %vm2178, %v2181, %v2183
      %v2185 = vsel %vm2177, %v2164, %v2167
      %v2186 = vsel %vm2180, %v2173, 920167782
      %v2187 = vsel %vm2179, %v2170, %v2186
      %v2188 = vsel %vm2178, %v2185, %v2187
      %v2189 = vsel %vm2177, %v2167, %v2170
      %v2190 = vsel %vm2180, %v2176, 1326507024
      %v2191 = vsel %vm2179, %v2173, %v2190
      %v2192 = vsel %vm2178, %v2189, %v2191
      %v2193 = vshll.u32 %v2153, 8
      %v2194 = vmul.u32.u64.compose %v2193, %v2192
      %v2195 = vextract.low.u32 %v2194
      %v2196 = vextract.high.u32 %v2194
      %v2197 = vmul.u32.u64.compose %v2193, %v2188
      %v2198 = vextract.low.u32 %v2197
      %v2199 = vextract.high.u32 %v2197
      %v2200 = vmul.u32 %v2193, %v2184
      %v2201 = vadd.s32 %v2196, %v2198
      %vm2202 = vc.u32 %v2196, %v2198
      %v2203 = vadd.s32 %v2199, 1
      %v2204 = vsel %vm2202, %v2203, %v2199
      %v2205 = vadd.s32 %v2200, %v2204
      %v2206 = vadd.s32 %v2205, 536870912
      %v2207 = vshrl.u32 %v2206, 30
      %v2208 = vshll.u32 %v2207, 30
      %v2209 = vsub.s32 %v2205, %v2208
      %vm2210 = vcmp.lt.s32.totalorder %v2209, 0
      %v2211 = vsub.s32 0, %v2209
      %v2212 = vsel %vm2210, %v2211, %v2209
      %v2213 = vclz %v2212
      %v2214 = vsub.s32 %v2213, 2
      %vm2215 = vcmp.gt.s32.totalorder 0, %v2214
      %v2216 = vsel %vm2215, 0, %v2214
      %v2217 = vsub.s32 32, %v2216
      %v2218 = vshll.u32 %v2209, %v2216
      %v2219 = vshrl.u32 %v2201, %v2217
      %v2220 = vor.u32 %v2218, %v2219
      %v2221 = vsub.s32 4294967266, %v2216
      %v2222 = vadd.s32 %v2221, 127
      %v2223 = vshll.u32 %v2222, 23
      %v2224 = vor.u32 4788187, %v2223
      %v2225 = vand.u32 2147483647, %v2224
      %v2227 = vcvt.s32.f32 %v2220
      %v2228 = vmul.f32 %v2227, %v2225
      %v2229 = vxor.u32 %v2228, 2147483648
      %v2230 = vsel %vm2147, %v2229, %v2228
      %v2231 = vsub.s32 4, %v2207
      %v2232 = vsel %vm2147, %v2231, %v2207
      %v2233 = vsel %vm2146, %v1268, %v2230
      %v2234 = vsel %vm2146, 0, %v2232
      %v2235 = vcosq.f32.pop %v2233
      %v2236 = vsinq.f32.pop %v2233
      %vm2237 = vweird.f32 %v1268
      %v2238 = vadd.s32 %v2234, 3
      %v2239 = vand.u32 %v2238, 3
      %vm2240 = vcmp.lt.s32.totalorder %v2239, 2
      %vm2241 = vcmp.eq.s32.totalorder %v2239, 0
      %v2242 = vxor.u32 %v2236, 2147483648
      %v2243 = vsel %vm2241, %v2235, %v2242
      %vm2244 = vcmp.eq.s32.totalorder %v2239, 2
      %v2245 = vxor.u32 %v2235, 2147483648
      %v2246 = vsel %vm2244, %v2245, %v2236
      %v2247 = vsel %vm2240, %v2243, %v2246
      %v2248 = vsel %vm2237, nan, %v2247
      %v2249 = vand.u32 2147483647, %v1274
      %vm2250 = vcmp.le.f32.partialorder %v2249, 0.7853982
      %vm2251 = vcmp.lt.s32.totalorder %v1274, 0
      %v2252 = vand.u32 %v1274, 2139095040
      %v2253 = vshrl.u32 %v2252, 23
      %v2254 = vsub.s32 %v2253, 127
      %v2255 = vand.u32 2147483647, %v1274
      %v2256 = vand.u32 %v2255, 8388607
      %v2257 = vor.u32 %v2256, 8388608
      %v2258 = vsub.s32 0, %v2257
      %v2259 = vadd.s32 %v2254, 1
      %vm2260 = vcmp.gt.s32.totalorder %v2259, 0
      %v2261 = vsel %vm2260, %v2259, 0
      %v2262 = vshrl.u32 %v2261, 5
      %v2263 = vand.u32 %v2261, 31
      %v2264 = vsub.s32 32, %v2263
      %v2265 = vshrl.u32 683565275, %v2264
      %v2266 = vshll.u32 683565275, %v2263
      %v2267 = vshrl.u32 2475754826, %v2264
      %v2268 = vor.u32 %v2266, %v2267
      %v2269 = vshll.u32 2475754826, %v2263
      %v2270 = vshrl.u32 2131351028, %v2264
      %v2271 = vor.u32 %v2269, %v2270
      %v2272 = vshll.u32 2131351028, %v2263
      %v2273 = vshrl.u32 2102212464, %v2264
      %v2274 = vor.u32 %v2272, %v2273
      %v2275 = vshll.u32 2102212464, %v2263
      %v2276 = vshrl.u32 920167782, %v2264
      %v2277 = vor.u32 %v2275, %v2276
      %v2278 = vshll.u32 920167782, %v2263
      %v2279 = vshrl.u32 1326507024, %v2264
      %v2280 = vor.u32 %v2278, %v2279
      %vm2281 = vcmp.lt.s32.totalorder %v2262, 1
      %vm2282 = vcmp.lt.s32.totalorder %v2262, 2
      %vm2283 = vcmp.lt.s32.totalorder %v2262, 3
      %vm2284 = vcmp.lt.s32.totalorder %v2262, 4
      %v2285 = vsel %vm2281, %v2265, %v2268
      %v2286 = vsel %vm2284, %v2274, 2102212464
      %v2287 = vsel %vm2283, %v2271, %v2286
      %v2288 = vsel %vm2282, %v2285, %v2287
      %v2289 = vsel %vm2281, %v2268, %v2271
      %v2290 = vsel %vm2284, %v2277, 920167782
      %v2291 = vsel %vm2283, %v2274, %v2290
      %v2292 = vsel %vm2282, %v2289, %v2291
      %v2293 = vsel %vm2281, %v2271, %v2274
      %v2294 = vsel %vm2284, %v2280, 1326507024
      %v2295 = vsel %vm2283, %v2277, %v2294
      %v2296 = vsel %vm2282, %v2293, %v2295
      %v2297 = vshll.u32 %v2257, 8
      %v2298 = vmul.u32.u64.compose %v2297, %v2296
      %v2299 = vextract.low.u32 %v2298
      %v2300 = vextract.high.u32 %v2298
      %v2301 = vmul.u32.u64.compose %v2297, %v2292
      %v2302 = vextract.low.u32 %v2301
      %v2303 = vextract.high.u32 %v2301
      %v2304 = vmul.u32 %v2297, %v2288
      %v2305 = vadd.s32 %v2300, %v2302
      %vm2306 = vc.u32 %v2300, %v2302
      %v2307 = vadd.s32 %v2303, 1
      %v2308 = vsel %vm2306, %v2307, %v2303
      %v2309 = vadd.s32 %v2304, %v2308
      %v2310 = vadd.s32 %v2309, 536870912
      %v2311 = vshrl.u32 %v2310, 30
      %v2312 = vshll.u32 %v2311, 30
      %v2313 = vsub.s32 %v2309, %v2312
      %vm2314 = vcmp.lt.s32.totalorder %v2313, 0
      %v2315 = vsub.s32 0, %v2313
      %v2316 = vsel %vm2314, %v2315, %v2313
      %v2317 = vclz %v2316
      %v2318 = vsub.s32 %v2317, 2
      %vm2319 = vcmp.gt.s32.totalorder 0, %v2318
      %v2320 = vsel %vm2319, 0, %v2318
      %v2321 = vsub.s32 32, %v2320
      %v2322 = vshll.u32 %v2313, %v2320
      %v2323 = vshrl.u32 %v2305, %v2321
      %v2324 = vor.u32 %v2322, %v2323
      %v2325 = vsub.s32 4294967266, %v2320
      %v2326 = vadd.s32 %v2325, 127
      %v2327 = vshll.u32 %v2326, 23
      %v2328 = vor.u32 4788187, %v2327
      %v2329 = vand.u32 2147483647, %v2328
      %v2331 = vcvt.s32.f32 %v2324
      %v2332 = vmul.f32 %v2331, %v2329
      %v2333 = vxor.u32 %v2332, 2147483648
      %v2334 = vsel %vm2251, %v2333, %v2332
      %v2335 = vsub.s32 4, %v2311
      %v2336 = vsel %vm2251, %v2335, %v2311
      %v2337 = vsel %vm2250, %v1274, %v2334
      %v2338 = vsel %vm2250, 0, %v2336
      %v2339 = vcosq.f32.pop %v2337
      %v2340 = vsinq.f32.pop %v2337
      %vm2341 = vweird.f32 %v1274
      %v2342 = vadd.s32 %v2338, 3
      %v2343 = vand.u32 %v2342, 3
      %vm2344 = vcmp.lt.s32.totalorder %v2343, 2
      %vm2345 = vcmp.eq.s32.totalorder %v2343, 0
      %v2346 = vxor.u32 %v2340, 2147483648
      %v2347 = vsel %vm2345, %v2339, %v2346
      %vm2348 = vcmp.eq.s32.totalorder %v2343, 2
      %v2349 = vxor.u32 %v2339, 2147483648
      %v2350 = vsel %vm2348, %v2349, %v2340
      %v2351 = vsel %vm2344, %v2347, %v2350
      %v2352 = vsel %vm2341, nan, %v2351
      %v2353 = vand.u32 2147483647, %v1280
      %vm2354 = vcmp.le.f32.partialorder %v2353, 0.7853982
      %vm2355 = vcmp.lt.s32.totalorder %v1280, 0
      %v2356 = vand.u32 %v1280, 2139095040
      %v2357 = vshrl.u32 %v2356, 23
      %v2358 = vsub.s32 %v2357, 127
      %v2359 = vand.u32 2147483647, %v1280
      %v2360 = vand.u32 %v2359, 8388607
      %v2361 = vor.u32 %v2360, 8388608
      %v2362 = vsub.s32 0, %v2361
      %v2363 = vadd.s32 %v2358, 1
      %vm2364 = vcmp.gt.s32.totalorder %v2363, 0
      %v2365 = vsel %vm2364, %v2363, 0
      %v2366 = vshrl.u32 %v2365, 5
      %v2367 = vand.u32 %v2365, 31
      %v2368 = vsub.s32 32, %v2367
      %v2369 = vshrl.u32 683565275, %v2368
      %v2370 = vshll.u32 683565275, %v2367
      %v2371 = vshrl.u32 2475754826, %v2368
      %v2372 = vor.u32 %v2370, %v2371
      %v2373 = vshll.u32 2475754826, %v2367
      %v2374 = vshrl.u32 2131351028, %v2368
      %v2375 = vor.u32 %v2373, %v2374
      %v2376 = vshll.u32 2131351028, %v2367
      %v2377 = vshrl.u32 2102212464, %v2368
      %v2378 = vor.u32 %v2376, %v2377
      %v2379 = vshll.u32 2102212464, %v2367
      %v2380 = vshrl.u32 920167782, %v2368
      %v2381 = vor.u32 %v2379, %v2380
      %v2382 = vshll.u32 920167782, %v2367
      %v2383 = vshrl.u32 1326507024, %v2368
      %v2384 = vor.u32 %v2382, %v2383
      %vm2385 = vcmp.lt.s32.totalorder %v2366, 1
      %vm2386 = vcmp.lt.s32.totalorder %v2366, 2
      %vm2387 = vcmp.lt.s32.totalorder %v2366, 3
      %vm2388 = vcmp.lt.s32.totalorder %v2366, 4
      %v2389 = vsel %vm2385, %v2369, %v2372
      %v2390 = vsel %vm2388, %v2378, 2102212464
      %v2391 = vsel %vm2387, %v2375, %v2390
      %v2392 = vsel %vm2386, %v2389, %v2391
      %v2393 = vsel %vm2385, %v2372, %v2375
      %v2394 = vsel %vm2388, %v2381, 920167782
      %v2395 = vsel %vm2387, %v2378, %v2394
      %v2396 = vsel %vm2386, %v2393, %v2395
      %v2397 = vsel %vm2385, %v2375, %v2378
      %v2398 = vsel %vm2388, %v2384, 1326507024
      %v2399 = vsel %vm2387, %v2381, %v2398
      %v2400 = vsel %vm2386, %v2397, %v2399
      %v2401 = vshll.u32 %v2361, 8
      %v2402 = vmul.u32.u64.compose %v2401, %v2400
      %v2403 = vextract.low.u32 %v2402
      %v2404 = vextract.high.u32 %v2402
      %v2405 = vmul.u32.u64.compose %v2401, %v2396
      %v2406 = vextract.low.u32 %v2405
      %v2407 = vextract.high.u32 %v2405
      %v2408 = vmul.u32 %v2401, %v2392
      %v2409 = vadd.s32 %v2404, %v2406
      %vm2410 = vc.u32 %v2404, %v2406
      %v2411 = vadd.s32 %v2407, 1
      %v2412 = vsel %vm2410, %v2411, %v2407
      %v2413 = vadd.s32 %v2408, %v2412
      %v2414 = vadd.s32 %v2413, 536870912
      %v2415 = vshrl.u32 %v2414, 30
      %v2416 = vshll.u32 %v2415, 30
      %v2417 = vsub.s32 %v2413, %v2416
      %vm2418 = vcmp.lt.s32.totalorder %v2417, 0
      %v2419 = vsub.s32 0, %v2417
      %v2420 = vsel %vm2418, %v2419, %v2417
      %v2421 = vclz %v2420
      %v2422 = vsub.s32 %v2421, 2
      %vm2423 = vcmp.gt.s32.totalorder 0, %v2422
      %v2424 = vsel %vm2423, 0, %v2422
      %v2425 = vsub.s32 32, %v2424
      %v2426 = vshll.u32 %v2417, %v2424
      %v2427 = vshrl.u32 %v2409, %v2425
      %v2428 = vor.u32 %v2426, %v2427
      %v2429 = vsub.s32 4294967266, %v2424
      %v2430 = vadd.s32 %v2429, 127
      %v2431 = vshll.u32 %v2430, 23
      %v2432 = vor.u32 4788187, %v2431
      %v2433 = vand.u32 2147483647, %v2432
      %v2435 = vcvt.s32.f32 %v2428
      %v2436 = vmul.f32 %v2435, %v2433
      %v2437 = vxor.u32 %v2436, 2147483648
      %v2438 = vsel %vm2355, %v2437, %v2436
      %v2439 = vsub.s32 4, %v2415
      %v2440 = vsel %vm2355, %v2439, %v2415
      %v2441 = vsel %vm2354, %v1280, %v2438
      %v2442 = vsel %vm2354, 0, %v2440
      %v2443 = vcosq.f32.pop %v2441
      %v2444 = vsinq.f32.pop %v2441
      %vm2445 = vweird.f32 %v1280
      %v2446 = vadd.s32 %v2442, 3
      %v2447 = vand.u32 %v2446, 3
      %vm2448 = vcmp.lt.s32.totalorder %v2447, 2
      %vm2449 = vcmp.eq.s32.totalorder %v2447, 0
      %v2450 = vxor.u32 %v2444, 2147483648
      %v2451 = vsel %vm2449, %v2443, %v2450
      %vm2452 = vcmp.eq.s32.totalorder %v2447, 2
      %v2453 = vxor.u32 %v2443, 2147483648
      %v2454 = vsel %vm2452, %v2453, %v2444
      %v2455 = vsel %vm2448, %v2451, %v2454
      %v2456 = vsel %vm2445, nan, %v2455
      %v2457 = vand.u32 2147483647, %v1286
      %vm2458 = vcmp.le.f32.partialorder %v2457, 0.7853982
      %vm2459 = vcmp.lt.s32.totalorder %v1286, 0
      %v2460 = vand.u32 %v1286, 2139095040
      %v2461 = vshrl.u32 %v2460, 23
      %v2462 = vsub.s32 %v2461, 127
      %v2463 = vand.u32 2147483647, %v1286
      %v2464 = vand.u32 %v2463, 8388607
      %v2465 = vor.u32 %v2464, 8388608
      %v2466 = vsub.s32 0, %v2465
      %v2467 = vadd.s32 %v2462, 1
      %vm2468 = vcmp.gt.s32.totalorder %v2467, 0
      %v2469 = vsel %vm2468, %v2467, 0
      %v2470 = vshrl.u32 %v2469, 5
      %v2471 = vand.u32 %v2469, 31
      %v2472 = vsub.s32 32, %v2471
      %v2473 = vshrl.u32 683565275, %v2472
      %v2474 = vshll.u32 683565275, %v2471
      %v2475 = vshrl.u32 2475754826, %v2472
      %v2476 = vor.u32 %v2474, %v2475
      %v2477 = vshll.u32 2475754826, %v2471
      %v2478 = vshrl.u32 2131351028, %v2472
      %v2479 = vor.u32 %v2477, %v2478
      %v2480 = vshll.u32 2131351028, %v2471
      %v2481 = vshrl.u32 2102212464, %v2472
      %v2482 = vor.u32 %v2480, %v2481
      %v2483 = vshll.u32 2102212464, %v2471
      %v2484 = vshrl.u32 920167782, %v2472
      %v2485 = vor.u32 %v2483, %v2484
      %v2486 = vshll.u32 920167782, %v2471
      %v2487 = vshrl.u32 1326507024, %v2472
      %v2488 = vor.u32 %v2486, %v2487
      %vm2489 = vcmp.lt.s32.totalorder %v2470, 1
      %vm2490 = vcmp.lt.s32.totalorder %v2470, 2
      %vm2491 = vcmp.lt.s32.totalorder %v2470, 3
      %vm2492 = vcmp.lt.s32.totalorder %v2470, 4
      %v2493 = vsel %vm2489, %v2473, %v2476
      %v2494 = vsel %vm2492, %v2482, 2102212464
      %v2495 = vsel %vm2491, %v2479, %v2494
      %v2496 = vsel %vm2490, %v2493, %v2495
      %v2497 = vsel %vm2489, %v2476, %v2479
      %v2498 = vsel %vm2492, %v2485, 920167782
      %v2499 = vsel %vm2491, %v2482, %v2498
      %v2500 = vsel %vm2490, %v2497, %v2499
      %v2501 = vsel %vm2489, %v2479, %v2482
      %v2502 = vsel %vm2492, %v2488, 1326507024
      %v2503 = vsel %vm2491, %v2485, %v2502
      %v2504 = vsel %vm2490, %v2501, %v2503
      %v2505 = vshll.u32 %v2465, 8
      %v2506 = vmul.u32.u64.compose %v2505, %v2504
      %v2507 = vextract.low.u32 %v2506
      %v2508 = vextract.high.u32 %v2506
      %v2509 = vmul.u32.u64.compose %v2505, %v2500
      %v2510 = vextract.low.u32 %v2509
      %v2511 = vextract.high.u32 %v2509
      %v2512 = vmul.u32 %v2505, %v2496
      %v2513 = vadd.s32 %v2508, %v2510
      %vm2514 = vc.u32 %v2508, %v2510
      %v2515 = vadd.s32 %v2511, 1
      %v2516 = vsel %vm2514, %v2515, %v2511
      %v2517 = vadd.s32 %v2512, %v2516
      %v2518 = vadd.s32 %v2517, 536870912
      %v2519 = vshrl.u32 %v2518, 30
      %v2520 = vshll.u32 %v2519, 30
      %v2521 = vsub.s32 %v2517, %v2520
      %vm2522 = vcmp.lt.s32.totalorder %v2521, 0
      %v2523 = vsub.s32 0, %v2521
      %v2524 = vsel %vm2522, %v2523, %v2521
      %v2525 = vclz %v2524
      %v2526 = vsub.s32 %v2525, 2
      %vm2527 = vcmp.gt.s32.totalorder 0, %v2526
      %v2528 = vsel %vm2527, 0, %v2526
      %v2529 = vsub.s32 32, %v2528
      %v2530 = vshll.u32 %v2521, %v2528
      %v2531 = vshrl.u32 %v2513, %v2529
      %v2532 = vor.u32 %v2530, %v2531
      %v2533 = vsub.s32 4294967266, %v2528
      %v2534 = vadd.s32 %v2533, 127
      %v2535 = vshll.u32 %v2534, 23
      %v2536 = vor.u32 4788187, %v2535
      %v2537 = vand.u32 2147483647, %v2536
      %v2539 = vcvt.s32.f32 %v2532
      %v2540 = vmul.f32 %v2539, %v2537
      %v2541 = vxor.u32 %v2540, 2147483648
      %v2542 = vsel %vm2459, %v2541, %v2540
      %v2543 = vsub.s32 4, %v2519
      %v2544 = vsel %vm2459, %v2543, %v2519
      %v2545 = vsel %vm2458, %v1286, %v2542
      %v2546 = vsel %vm2458, 0, %v2544
      %v2547 = vcosq.f32.pop %v2545
      %v2548 = vsinq.f32.pop %v2545
      %vm2549 = vweird.f32 %v1286
      %v2550 = vadd.s32 %v2546, 3
      %v2551 = vand.u32 %v2550, 3
      %vm2552 = vcmp.lt.s32.totalorder %v2551, 2
      %vm2553 = vcmp.eq.s32.totalorder %v2551, 0
      %v2554 = vxor.u32 %v2548, 2147483648
      %v2555 = vsel %vm2553, %v2547, %v2554
      %vm2556 = vcmp.eq.s32.totalorder %v2551, 2
      %v2557 = vxor.u32 %v2547, 2147483648
      %v2558 = vsel %vm2556, %v2557, %v2548
      %v2559 = vsel %vm2552, %v2555, %v2558
      %v2560 = vsel %vm2549, nan, %v2559
      %v2561 = vand.u32 2147483647, %v1292
      %vm2562 = vcmp.le.f32.partialorder %v2561, 0.7853982
      %vm2563 = vcmp.lt.s32.totalorder %v1292, 0
      %v2564 = vand.u32 %v1292, 2139095040
      %v2565 = vshrl.u32 %v2564, 23
      %v2566 = vsub.s32 %v2565, 127
      %v2567 = vand.u32 2147483647, %v1292
      %v2568 = vand.u32 %v2567, 8388607
      %v2569 = vor.u32 %v2568, 8388608
      %v2570 = vsub.s32 0, %v2569
      %v2571 = vadd.s32 %v2566, 1
      %vm2572 = vcmp.gt.s32.totalorder %v2571, 0
      %v2573 = vsel %vm2572, %v2571, 0
      %v2574 = vshrl.u32 %v2573, 5
      %v2575 = vand.u32 %v2573, 31
      %v2576 = vsub.s32 32, %v2575
      %v2577 = vshrl.u32 683565275, %v2576
      %v2578 = vshll.u32 683565275, %v2575
      %v2579 = vshrl.u32 2475754826, %v2576
      %v2580 = vor.u32 %v2578, %v2579
      %v2581 = vshll.u32 2475754826, %v2575
      %v2582 = vshrl.u32 2131351028, %v2576
      %v2583 = vor.u32 %v2581, %v2582
      %v2584 = vshll.u32 2131351028, %v2575
      %v2585 = vshrl.u32 2102212464, %v2576
      %v2586 = vor.u32 %v2584, %v2585
      %v2587 = vshll.u32 2102212464, %v2575
      %v2588 = vshrl.u32 920167782, %v2576
      %v2589 = vor.u32 %v2587, %v2588
      %v2590 = vshll.u32 920167782, %v2575
      %v2591 = vshrl.u32 1326507024, %v2576
      %v2592 = vor.u32 %v2590, %v2591
      %vm2593 = vcmp.lt.s32.totalorder %v2574, 1
      %vm2594 = vcmp.lt.s32.totalorder %v2574, 2
      %vm2595 = vcmp.lt.s32.totalorder %v2574, 3
      %vm2596 = vcmp.lt.s32.totalorder %v2574, 4
      %v2597 = vsel %vm2593, %v2577, %v2580
      %v2598 = vsel %vm2596, %v2586, 2102212464
      %v2599 = vsel %vm2595, %v2583, %v2598
      %v2600 = vsel %vm2594, %v2597, %v2599
      %v2601 = vsel %vm2593, %v2580, %v2583
      %v2602 = vsel %vm2596, %v2589, 920167782
      %v2603 = vsel %vm2595, %v2586, %v2602
      %v2604 = vsel %vm2594, %v2601, %v2603
      %v2605 = vsel %vm2593, %v2583, %v2586
      %v2606 = vsel %vm2596, %v2592, 1326507024
      %v2607 = vsel %vm2595, %v2589, %v2606
      %v2608 = vsel %vm2594, %v2605, %v2607
      %v2609 = vshll.u32 %v2569, 8
      %v2610 = vmul.u32.u64.compose %v2609, %v2608
      %v2611 = vextract.low.u32 %v2610
      %v2612 = vextract.high.u32 %v2610
      %v2613 = vmul.u32.u64.compose %v2609, %v2604
      %v2614 = vextract.low.u32 %v2613
      %v2615 = vextract.high.u32 %v2613
      %v2616 = vmul.u32 %v2609, %v2600
      %v2617 = vadd.s32 %v2612, %v2614
      %vm2618 = vc.u32 %v2612, %v2614
      %v2619 = vadd.s32 %v2615, 1
      %v2620 = vsel %vm2618, %v2619, %v2615
      %v2621 = vadd.s32 %v2616, %v2620
      %v2622 = vadd.s32 %v2621, 536870912
      %v2623 = vshrl.u32 %v2622, 30
      %v2624 = vshll.u32 %v2623, 30
      %v2625 = vsub.s32 %v2621, %v2624
      %vm2626 = vcmp.lt.s32.totalorder %v2625, 0
      %v2627 = vsub.s32 0, %v2625
      %v2628 = vsel %vm2626, %v2627, %v2625
      %v2629 = vclz %v2628
      %v2630 = vsub.s32 %v2629, 2
      %vm2631 = vcmp.gt.s32.totalorder 0, %v2630
      %v2632 = vsel %vm2631, 0, %v2630
      %v2633 = vsub.s32 32, %v2632
      %v2634 = vshll.u32 %v2625, %v2632
      %v2635 = vshrl.u32 %v2617, %v2633
      %v2636 = vor.u32 %v2634, %v2635
      %v2637 = vsub.s32 4294967266, %v2632
      %v2638 = vadd.s32 %v2637, 127
      %v2639 = vshll.u32 %v2638, 23
      %v2640 = vor.u32 4788187, %v2639
      %v2641 = vand.u32 2147483647, %v2640
      %v2643 = vcvt.s32.f32 %v2636
      %v2644 = vmul.f32 %v2643, %v2641
      %v2645 = vxor.u32 %v2644, 2147483648
      %v2646 = vsel %vm2563, %v2645, %v2644
      %v2647 = vsub.s32 4, %v2623
      %v2648 = vsel %vm2563, %v2647, %v2623
      %v2649 = vsel %vm2562, %v1292, %v2646
      %v2650 = vsel %vm2562, 0, %v2648
      %v2651 = vcosq.f32.pop %v2649
      %v2652 = vsinq.f32.pop %v2649
      %vm2653 = vweird.f32 %v1292
      %v2654 = vadd.s32 %v2650, 3
      %v2655 = vand.u32 %v2654, 3
      %vm2656 = vcmp.lt.s32.totalorder %v2655, 2
      %vm2657 = vcmp.eq.s32.totalorder %v2655, 0
      %v2658 = vxor.u32 %v2652, 2147483648
      %v2659 = vsel %vm2657, %v2651, %v2658
      %vm2660 = vcmp.eq.s32.totalorder %v2655, 2
      %v2661 = vxor.u32 %v2651, 2147483648
      %v2662 = vsel %vm2660, %v2661, %v2652
      %v2663 = vsel %vm2656, %v2659, %v2662
      %v2664 = vsel %vm2653, nan, %v2663
      %v2665 = vand.u32 2147483647, %v1298
      %vm2666 = vcmp.le.f32.partialorder %v2665, 0.7853982
      %vm2667 = vcmp.lt.s32.totalorder %v1298, 0
      %v2668 = vand.u32 %v1298, 2139095040
      %v2669 = vshrl.u32 %v2668, 23
      %v2670 = vsub.s32 %v2669, 127
      %v2671 = vand.u32 2147483647, %v1298
      %v2672 = vand.u32 %v2671, 8388607
      %v2673 = vor.u32 %v2672, 8388608
      %v2674 = vsub.s32 0, %v2673
      %v2675 = vadd.s32 %v2670, 1
      %vm2676 = vcmp.gt.s32.totalorder %v2675, 0
      %v2677 = vsel %vm2676, %v2675, 0
      %v2678 = vshrl.u32 %v2677, 5
      %v2679 = vand.u32 %v2677, 31
      %v2680 = vsub.s32 32, %v2679
      %v2681 = vshrl.u32 683565275, %v2680
      %v2682 = vshll.u32 683565275, %v2679
      %v2683 = vshrl.u32 2475754826, %v2680
      %v2684 = vor.u32 %v2682, %v2683
      %v2685 = vshll.u32 2475754826, %v2679
      %v2686 = vshrl.u32 2131351028, %v2680
      %v2687 = vor.u32 %v2685, %v2686
      %v2688 = vshll.u32 2131351028, %v2679
      %v2689 = vshrl.u32 2102212464, %v2680
      %v2690 = vor.u32 %v2688, %v2689
      %v2691 = vshll.u32 2102212464, %v2679
      %v2692 = vshrl.u32 920167782, %v2680
      %v2693 = vor.u32 %v2691, %v2692
      %v2694 = vshll.u32 920167782, %v2679
      %v2695 = vshrl.u32 1326507024, %v2680
      %v2696 = vor.u32 %v2694, %v2695
      %vm2697 = vcmp.lt.s32.totalorder %v2678, 1
      %vm2698 = vcmp.lt.s32.totalorder %v2678, 2
      %vm2699 = vcmp.lt.s32.totalorder %v2678, 3
      %vm2700 = vcmp.lt.s32.totalorder %v2678, 4
      %v2701 = vsel %vm2697, %v2681, %v2684
      %v2702 = vsel %vm2700, %v2690, 2102212464
      %v2703 = vsel %vm2699, %v2687, %v2702
      %v2704 = vsel %vm2698, %v2701, %v2703
      %v2705 = vsel %vm2697, %v2684, %v2687
      %v2706 = vsel %vm2700, %v2693, 920167782
      %v2707 = vsel %vm2699, %v2690, %v2706
      %v2708 = vsel %vm2698, %v2705, %v2707
      %v2709 = vsel %vm2697, %v2687, %v2690
      %v2710 = vsel %vm2700, %v2696, 1326507024
      %v2711 = vsel %vm2699, %v2693, %v2710
      %v2712 = vsel %vm2698, %v2709, %v2711
      %v2713 = vshll.u32 %v2673, 8
      %v2714 = vmul.u32.u64.compose %v2713, %v2712
      %v2715 = vextract.low.u32 %v2714
      %v2716 = vextract.high.u32 %v2714
      %v2717 = vmul.u32.u64.compose %v2713, %v2708
      %v2718 = vextract.low.u32 %v2717
      %v2719 = vextract.high.u32 %v2717
      %v2720 = vmul.u32 %v2713, %v2704
      %v2721 = vadd.s32 %v2716, %v2718
      %vm2722 = vc.u32 %v2716, %v2718
      %v2723 = vadd.s32 %v2719, 1
      %v2724 = vsel %vm2722, %v2723, %v2719
      %v2725 = vadd.s32 %v2720, %v2724
      %v2726 = vadd.s32 %v2725, 536870912
      %v2727 = vshrl.u32 %v2726, 30
      %v2728 = vshll.u32 %v2727, 30
      %v2729 = vsub.s32 %v2725, %v2728
      %vm2730 = vcmp.lt.s32.totalorder %v2729, 0
      %v2731 = vsub.s32 0, %v2729
      %v2732 = vsel %vm2730, %v2731, %v2729
      %v2733 = vclz %v2732
      %v2734 = vsub.s32 %v2733, 2
      %vm2735 = vcmp.gt.s32.totalorder 0, %v2734
      %v2736 = vsel %vm2735, 0, %v2734
      %v2737 = vsub.s32 32, %v2736
      %v2738 = vshll.u32 %v2729, %v2736
      %v2739 = vshrl.u32 %v2721, %v2737
      %v2740 = vor.u32 %v2738, %v2739
      %v2741 = vsub.s32 4294967266, %v2736
      %v2742 = vadd.s32 %v2741, 127
      %v2743 = vshll.u32 %v2742, 23
      %v2744 = vor.u32 4788187, %v2743
      %v2745 = vand.u32 2147483647, %v2744
      %v2747 = vcvt.s32.f32 %v2740
      %v2748 = vmul.f32 %v2747, %v2745
      %v2749 = vxor.u32 %v2748, 2147483648
      %v2750 = vsel %vm2667, %v2749, %v2748
      %v2751 = vsub.s32 4, %v2727
      %v2752 = vsel %vm2667, %v2751, %v2727
      %v2753 = vsel %vm2666, %v1298, %v2750
      %v2754 = vsel %vm2666, 0, %v2752
      %v2755 = vcosq.f32.pop %v2753
      %v2756 = vsinq.f32.pop %v2753
      %vm2757 = vweird.f32 %v1298
      %v2758 = vadd.s32 %v2754, 3
      %v2759 = vand.u32 %v2758, 3
      %vm2760 = vcmp.lt.s32.totalorder %v2759, 2
      %vm2761 = vcmp.eq.s32.totalorder %v2759, 0
      %v2762 = vxor.u32 %v2756, 2147483648
      %v2763 = vsel %vm2761, %v2755, %v2762
      %vm2764 = vcmp.eq.s32.totalorder %v2759, 2
      %v2765 = vxor.u32 %v2755, 2147483648
      %v2766 = vsel %vm2764, %v2765, %v2756
      %v2767 = vsel %vm2760, %v2763, %v2766
      %v2768 = vsel %vm2757, nan, %v2767
      %v2769 = vand.u32 2147483647, %v1304
      %vm2770 = vcmp.le.f32.partialorder %v2769, 0.7853982
      %vm2771 = vcmp.lt.s32.totalorder %v1304, 0
      %v2772 = vand.u32 %v1304, 2139095040
      %v2773 = vshrl.u32 %v2772, 23
      %v2774 = vsub.s32 %v2773, 127
      %v2775 = vand.u32 2147483647, %v1304
      %v2776 = vand.u32 %v2775, 8388607
      %v2777 = vor.u32 %v2776, 8388608
      %v2778 = vsub.s32 0, %v2777
      %v2779 = vadd.s32 %v2774, 1
      %vm2780 = vcmp.gt.s32.totalorder %v2779, 0
      %v2781 = vsel %vm2780, %v2779, 0
      %v2782 = vshrl.u32 %v2781, 5
      %v2783 = vand.u32 %v2781, 31
      %v2784 = vsub.s32 32, %v2783
      %v2785 = vshrl.u32 683565275, %v2784
      %v2786 = vshll.u32 683565275, %v2783
      %v2787 = vshrl.u32 2475754826, %v2784
      %v2788 = vor.u32 %v2786, %v2787
      %v2789 = vshll.u32 2475754826, %v2783
      %v2790 = vshrl.u32 2131351028, %v2784
      %v2791 = vor.u32 %v2789, %v2790
      %v2792 = vshll.u32 2131351028, %v2783
      %v2793 = vshrl.u32 2102212464, %v2784
      %v2794 = vor.u32 %v2792, %v2793
      %v2795 = vshll.u32 2102212464, %v2783
      %v2796 = vshrl.u32 920167782, %v2784
      %v2797 = vor.u32 %v2795, %v2796
      %v2798 = vshll.u32 920167782, %v2783
      %v2799 = vshrl.u32 1326507024, %v2784
      %v2800 = vor.u32 %v2798, %v2799
      %vm2801 = vcmp.lt.s32.totalorder %v2782, 1
      %vm2802 = vcmp.lt.s32.totalorder %v2782, 2
      %vm2803 = vcmp.lt.s32.totalorder %v2782, 3
      %vm2804 = vcmp.lt.s32.totalorder %v2782, 4
      %v2805 = vsel %vm2801, %v2785, %v2788
      %v2806 = vsel %vm2804, %v2794, 2102212464
      %v2807 = vsel %vm2803, %v2791, %v2806
      %v2808 = vsel %vm2802, %v2805, %v2807
      %v2809 = vsel %vm2801, %v2788, %v2791
      %v2810 = vsel %vm2804, %v2797, 920167782
      %v2811 = vsel %vm2803, %v2794, %v2810
      %v2812 = vsel %vm2802, %v2809, %v2811
      %v2813 = vsel %vm2801, %v2791, %v2794
      %v2814 = vsel %vm2804, %v2800, 1326507024
      %v2815 = vsel %vm2803, %v2797, %v2814
      %v2816 = vsel %vm2802, %v2813, %v2815
      %v2817 = vshll.u32 %v2777, 8
      %v2818 = vmul.u32.u64.compose %v2817, %v2816
      %v2819 = vextract.low.u32 %v2818
      %v2820 = vextract.high.u32 %v2818
      %v2821 = vmul.u32.u64.compose %v2817, %v2812
      %v2822 = vextract.low.u32 %v2821
      %v2823 = vextract.high.u32 %v2821
      %v2824 = vmul.u32 %v2817, %v2808
      %v2825 = vadd.s32 %v2820, %v2822
      %vm2826 = vc.u32 %v2820, %v2822
      %v2827 = vadd.s32 %v2823, 1
      %v2828 = vsel %vm2826, %v2827, %v2823
      %v2829 = vadd.s32 %v2824, %v2828
      %v2830 = vadd.s32 %v2829, 536870912
      %v2831 = vshrl.u32 %v2830, 30
      %v2832 = vshll.u32 %v2831, 30
      %v2833 = vsub.s32 %v2829, %v2832
      %vm2834 = vcmp.lt.s32.totalorder %v2833, 0
      %v2835 = vsub.s32 0, %v2833
      %v2836 = vsel %vm2834, %v2835, %v2833
      %v2837 = vclz %v2836
      %v2838 = vsub.s32 %v2837, 2
      %vm2839 = vcmp.gt.s32.totalorder 0, %v2838
      %v2840 = vsel %vm2839, 0, %v2838
      %v2841 = vsub.s32 32, %v2840
      %v2842 = vshll.u32 %v2833, %v2840
      %v2843 = vshrl.u32 %v2825, %v2841
      %v2844 = vor.u32 %v2842, %v2843
      %v2845 = vsub.s32 4294967266, %v2840
      %v2846 = vadd.s32 %v2845, 127
      %v2847 = vshll.u32 %v2846, 23
      %v2848 = vor.u32 4788187, %v2847
      %v2849 = vand.u32 2147483647, %v2848
      %v2851 = vcvt.s32.f32 %v2844
      %v2852 = vmul.f32 %v2851, %v2849
      %v2853 = vxor.u32 %v2852, 2147483648
      %v2854 = vsel %vm2771, %v2853, %v2852
      %v2855 = vsub.s32 4, %v2831
      %v2856 = vsel %vm2771, %v2855, %v2831
      %v2857 = vsel %vm2770, %v1304, %v2854
      %v2858 = vsel %vm2770, 0, %v2856
      %v2859 = vcosq.f32.pop %v2857
      %v2860 = vsinq.f32.pop %v2857
      %vm2861 = vweird.f32 %v1304
      %v2862 = vadd.s32 %v2858, 3
      %v2863 = vand.u32 %v2862, 3
      %vm2864 = vcmp.lt.s32.totalorder %v2863, 2
      %vm2865 = vcmp.eq.s32.totalorder %v2863, 0
      %v2866 = vxor.u32 %v2860, 2147483648
      %v2867 = vsel %vm2865, %v2859, %v2866
      %vm2868 = vcmp.eq.s32.totalorder %v2863, 2
      %v2869 = vxor.u32 %v2859, 2147483648
      %v2870 = vsel %vm2868, %v2869, %v2860
      %v2871 = vsel %vm2864, %v2867, %v2870
      %v2872 = vsel %vm2861, nan, %v2871
      %v2873 = vand.u32 2147483647, %v1310
      %vm2874 = vcmp.le.f32.partialorder %v2873, 0.7853982
      %vm2875 = vcmp.lt.s32.totalorder %v1310, 0
      %v2876 = vand.u32 %v1310, 2139095040
      %v2877 = vshrl.u32 %v2876, 23
      %v2878 = vsub.s32 %v2877, 127
      %v2879 = vand.u32 2147483647, %v1310
      %v2880 = vand.u32 %v2879, 8388607
      %v2881 = vor.u32 %v2880, 8388608
      %v2882 = vsub.s32 0, %v2881
      %v2883 = vadd.s32 %v2878, 1
      %vm2884 = vcmp.gt.s32.totalorder %v2883, 0
      %v2885 = vsel %vm2884, %v2883, 0
      %v2886 = vshrl.u32 %v2885, 5
      %v2887 = vand.u32 %v2885, 31
      %v2888 = vsub.s32 32, %v2887
      %v2889 = vshrl.u32 683565275, %v2888
      %v2890 = vshll.u32 683565275, %v2887
      %v2891 = vshrl.u32 2475754826, %v2888
      %v2892 = vor.u32 %v2890, %v2891
      %v2893 = vshll.u32 2475754826, %v2887
      %v2894 = vshrl.u32 2131351028, %v2888
      %v2895 = vor.u32 %v2893, %v2894
      %v2896 = vshll.u32 2131351028, %v2887
      %v2897 = vshrl.u32 2102212464, %v2888
      %v2898 = vor.u32 %v2896, %v2897
      %v2899 = vshll.u32 2102212464, %v2887
      %v2900 = vshrl.u32 920167782, %v2888
      %v2901 = vor.u32 %v2899, %v2900
      %v2902 = vshll.u32 920167782, %v2887
      %v2903 = vshrl.u32 1326507024, %v2888
      %v2904 = vor.u32 %v2902, %v2903
      %vm2905 = vcmp.lt.s32.totalorder %v2886, 1
      %vm2906 = vcmp.lt.s32.totalorder %v2886, 2
      %vm2907 = vcmp.lt.s32.totalorder %v2886, 3
      %vm2908 = vcmp.lt.s32.totalorder %v2886, 4
      %v2909 = vsel %vm2905, %v2889, %v2892
      %v2910 = vsel %vm2908, %v2898, 2102212464
      %v2911 = vsel %vm2907, %v2895, %v2910
      %v2912 = vsel %vm2906, %v2909, %v2911
      %v2913 = vsel %vm2905, %v2892, %v2895
      %v2914 = vsel %vm2908, %v2901, 920167782
      %v2915 = vsel %vm2907, %v2898, %v2914
      %v2916 = vsel %vm2906, %v2913, %v2915
      %v2917 = vsel %vm2905, %v2895, %v2898
      %v2918 = vsel %vm2908, %v2904, 1326507024
      %v2919 = vsel %vm2907, %v2901, %v2918
      %v2920 = vsel %vm2906, %v2917, %v2919
      %v2921 = vshll.u32 %v2881, 8
      %v2922 = vmul.u32.u64.compose %v2921, %v2920
      %v2923 = vextract.low.u32 %v2922
      %v2924 = vextract.high.u32 %v2922
      %v2925 = vmul.u32.u64.compose %v2921, %v2916
      %v2926 = vextract.low.u32 %v2925
      %v2927 = vextract.high.u32 %v2925
      %v2928 = vmul.u32 %v2921, %v2912
      %v2929 = vadd.s32 %v2924, %v2926
      %vm2930 = vc.u32 %v2924, %v2926
      %v2931 = vadd.s32 %v2927, 1
      %v2932 = vsel %vm2930, %v2931, %v2927
      %v2933 = vadd.s32 %v2928, %v2932
      %v2934 = vadd.s32 %v2933, 536870912
      %v2935 = vshrl.u32 %v2934, 30
      %v2936 = vshll.u32 %v2935, 30
      %v2937 = vsub.s32 %v2933, %v2936
      %vm2938 = vcmp.lt.s32.totalorder %v2937, 0
      %v2939 = vsub.s32 0, %v2937
      %v2940 = vsel %vm2938, %v2939, %v2937
      %v2941 = vclz %v2940
      %v2942 = vsub.s32 %v2941, 2
      %vm2943 = vcmp.gt.s32.totalorder 0, %v2942
      %v2944 = vsel %vm2943, 0, %v2942
      %v2945 = vsub.s32 32, %v2944
      %v2946 = vshll.u32 %v2937, %v2944
      %v2947 = vshrl.u32 %v2929, %v2945
      %v2948 = vor.u32 %v2946, %v2947
      %v2949 = vsub.s32 4294967266, %v2944
      %v2950 = vadd.s32 %v2949, 127
      %v2951 = vshll.u32 %v2950, 23
      %v2952 = vor.u32 4788187, %v2951
      %v2953 = vand.u32 2147483647, %v2952
      %v2955 = vcvt.s32.f32 %v2948
      %v2956 = vmul.f32 %v2955, %v2953
      %v2957 = vxor.u32 %v2956, 2147483648
      %v2958 = vsel %vm2875, %v2957, %v2956
      %v2959 = vsub.s32 4, %v2935
      %v2960 = vsel %vm2875, %v2959, %v2935
      %v2961 = vsel %vm2874, %v1310, %v2958
      %v2962 = vsel %vm2874, 0, %v2960
      %v2963 = vcosq.f32.pop %v2961
      %v2964 = vsinq.f32.pop %v2961
      %vm2965 = vweird.f32 %v1310
      %v2966 = vadd.s32 %v2962, 3
      %v2967 = vand.u32 %v2966, 3
      %vm2968 = vcmp.lt.s32.totalorder %v2967, 2
      %vm2969 = vcmp.eq.s32.totalorder %v2967, 0
      %v2970 = vxor.u32 %v2964, 2147483648
      %v2971 = vsel %vm2969, %v2963, %v2970
      %vm2972 = vcmp.eq.s32.totalorder %v2967, 2
      %v2973 = vxor.u32 %v2963, 2147483648
      %v2974 = vsel %vm2972, %v2973, %v2964
      %v2975 = vsel %vm2968, %v2971, %v2974
      %v2976 = vsel %vm2965, nan, %v2975
      %2993 = vrot.lane.b32.xlu0 %v1416, 3
      %v2994 = vpop.permute.xlu0 %2993
      %2995 = vrot.lane.b32.xlu0 %v1520, 3
      %v2996 = vpop.permute.xlu0 %2995
      %2997 = vrot.lane.b32.xlu0 %v1624, 3
      %v2998 = vpop.permute.xlu0 %2997
      %2999 = vrot.lane.b32.xlu0 %v1728, 3
      %v3000 = vpop.permute.xlu0 %2999
      %3001 = vrot.lane.b32.xlu0 %v1832, 3
      %v3002 = vpop.permute.xlu0 %3001
      %3003 = vrot.lane.b32.xlu0 %v1936, 3
      %v3004 = vpop.permute.xlu0 %3003
      %3005 = vrot.lane.b32.xlu0 %v2040, 3
      %v3006 = vpop.permute.xlu0 %3005
      %3007 = vrot.lane.b32.xlu0 %v2144, 3
      %v3008 = vpop.permute.xlu0 %3007
      %3009 = vrot.lane.b32.xlu0 %v2248, 3
      %v3010 = vpop.permute.xlu0 %3009
      %3011 = vrot.lane.b32.xlu0 %v2352, 3
      %v3012 = vpop.permute.xlu0 %3011
      %3013 = vrot.lane.b32.xlu0 %v2456, 3
      %v3014 = vpop.permute.xlu0 %3013
      %3015 = vrot.lane.b32.xlu0 %v2560, 3
      %v3016 = vpop.permute.xlu0 %3015
      %3017 = vrot.lane.b32.xlu0 %v2664, 3
      %v3018 = vpop.permute.xlu0 %3017
      %3019 = vrot.lane.b32.xlu0 %v2768, 3
      %v3020 = vpop.permute.xlu0 %3019
      %3021 = vrot.lane.b32.xlu0 %v2872, 3
      %v3022 = vpop.permute.xlu0 %3021
      %3023 = vrot.lane.b32.xlu0 %v2976, 3
      %v3024 = vpop.permute.xlu0 %3023
      %v3041 = vsel %vm169, %v147, %v2994
      %v3042 = vsel %vm169, %v148, %v2996
      %v3043 = vsel %vm169, %v149, %v2998
      %v3044 = vsel %vm169, %v150, %v3000
      %v3045 = vsel %vm169, %v151, %v3002
      %v3046 = vsel %vm169, %v152, %v3004
      %v3047 = vsel %vm169, %v153, %v3006
      %v3048 = vsel %vm169, %v154, %v3008
      %v3049 = vsel %vm169, %v155, %v3010
      %v3050 = vsel %vm169, %v156, %v3012
      %v3051 = vsel %vm169, %v157, %v3014
      %v3052 = vsel %vm169, %v158, %v3016
      %v3053 = vsel %vm169, %v159, %v3018
      %v3054 = vsel %vm169, %v160, %v3020
      %v3055 = vsel %vm169, %v161, %v3022
      %v3056 = vsel %vm169, %v162, %v3024
      %vm3057 = vcmask 809984
      %3058 = vst.msk [vmem:[%s145] sm:$0xff] %vm3057, %v3041
      %3059 = vst.msk [vmem:[%s145 + $0x8] sm:$0xff] %vm3057, %v3042
      %3060 = vst.msk [vmem:[%s145 + $0x10] sm:$0xff] %vm3057, %v3043
      %3061 = vst.msk [vmem:[%s145 + $0x18] sm:$0xff] %vm3057, %v3044
      %3062 = vst.msk [vmem:[%s145 + $0x20] sm:$0xff] %vm3057, %v3045
      %3063 = vst.msk [vmem:[%s145 + $0x28] sm:$0xff] %vm3057, %v3046
      %3064 = vst.msk [vmem:[%s145 + $0x30] sm:$0xff] %vm3057, %v3047
      %3065 = vst.msk [vmem:[%s145 + $0x38] sm:$0xff] %vm3057, %v3048
      %3066 = vst.msk [vmem:[%s145 + $0x40] sm:$0xff] %vm3057, %v3049
      %3067 = vst.msk [vmem:[%s145 + $0x48] sm:$0xff] %vm3057, %v3050
      %3068 = vst.msk [vmem:[%s145 + $0x50] sm:$0xff] %vm3057, %v3051
      %3069 = vst.msk [vmem:[%s145 + $0x58] sm:$0xff] %vm3057, %v3052
      %3070 = vst.msk [vmem:[%s145 + $0x60] sm:$0xff] %vm3057, %v3053
      %3071 = vst.msk [vmem:[%s145 + $0x68] sm:$0xff] %vm3057, %v3054
      %3072 = vst.msk [vmem:[%s145 + $0x70] sm:$0xff] %vm3057, %v3055
      %3073 = vst.msk [vmem:[%s145 + $0x78] sm:$0xff] %vm3057, %v3056
      %s3074 = smul.u32 16, %s13
      %p3075 = scmp.lt.s32.totalorder %s3074, 31
      %s3076 = scalar_select %p3075, %s3074, 31
      %s3077 = smul.addr %s3076, 8
      %s3078 = scalar_lea.vmem %s2, %s3077
      // Predicated region
      $region29: #{tpu_custom_call.1} parent=27 // pred_check
        %p3079 = pneg %p78
      $region30: #{tpu_custom_call.1} parent=27 // pred_check_branch
        %3081 = sbr.rel (%p3079) target = $region32
      $region31: #{tpu_custom_call.1} parent=27 // pred_region
        %s3082 = smul.u32 16, %s13
      $region32: #{tpu_custom_call.1} parent=27 // pred_fallthru
        _
    $region28: #{tpu_custom_call.1} parent=5 // pred_fallthru
      _
    %p3083 = scmp.le.s32.totalorder 2, %s8
    // Predicated region
    $region33: #{tpu_custom_call.1} parent=5 // pred_check
      %p3084 = pneg %p3083
    $region34: #{tpu_custom_call.1} parent=5 // pred_check_branch
      %3086 = sbr.rel (%p3084) target = $region36
    $region35: #{tpu_custom_call.1} parent=5 // pred_region
      %s3087 = ssub.s32 %s8, 2
      // Predicated region
      $region37: #{tpu_custom_call.1} parent=35 // pred_check
        %p3088 = pneg %p84
      $region38: #{tpu_custom_call.1} parent=35 // pred_check_branch
        %3090 = sbr.rel (%p3088) target = $region40
      $region39: #{tpu_custom_call.1} parent=35 // pred_region
        %s3091 = smul.u32 16, %s14
        %p3092 = scmp.lt.s32.totalorder %s3091, 31
        %s3093 = scalar_select %p3092, %s3091, 31
        %s3094 = smul.addr %s3093, 8
        %s3095 = scalar_lea.vmem %s2, %s3094
      $region40: #{tpu_custom_call.1} parent=35 // pred_fallthru
        _
    $region36: #{tpu_custom_call.1} parent=5 // pred_fallthru
      _
  $region6: #{tpu_custom_call.1} parent=0 // loop_footer
    %s12 = sadd.s32 1, %s8
  $region7: #{tpu_custom_call.1} parent=0 // loop_footer_branch
    %7 = sbr.rel target = $region3
  $region8: #{tpu_custom_call.1} parent=0 // loop_exit
    _

</llo_original>
